<compile_context>
chip_gen: v7x
topology: tpu7x:2x2x1
jax: 0.10.0
libtpu: 0.0.40
codegen_flags: <defaults>
</compile_context>

<pallas_src>
import functools

import jax
import jax.numpy as jnp
from jax.experimental import pallas as pl
from jax.experimental.pallas import tpu as pltpu

NPAD = 128  # lane-dense padded width of the classifier head


# ----------------------------------------------------------------------------
# Fused kernel: one grid step == one image.
#   conv3x3(same) + bias + ReLU  ->  global average pool  ->  linear head
# Everything stays in VMEM; only the (1, NPAD) logits row is stored.
# ----------------------------------------------------------------------------
def _fused_kernel(x_ref, cw_ref, cb_ref, fw_ref, fb_ref, o_ref,
                  *, H, W, Cin, Cout, Npad):
    HW = H * W
    x = x_ref[0]                                        # (H+2, W+2, Cin) f32

    # --- conv as 9 accumulated MXU dots on shifted windows (in-VMEM im2col) ---
    acc = jnp.zeros((HW, Cout), jnp.float32)
    for k in range(9):
        dy, dx = k // 3, k % 3
        win = x[dy:dy + H, dx:dx + W, :].reshape(HW, Cin).astype(jnp.bfloat16)
        acc = acc + jnp.dot(win, cw_ref[k],             # (Cin, Cout) bf16
                            preferred_element_type=jnp.float32)
    acc = jnp.maximum(acc + cb_ref[...], 0.0)           # f32 epilogue (v5e-safe)

    # --- global average pool over the HW spatial positions (f32) ---
    feats = jnp.sum(acc, axis=0, keepdims=True) * (1.0 / HW)        # (1, Cout)

    # --- classifier head, lane-dense padded output (Npad = 128) ---
    logits = jnp.dot(feats.astype(jnp.bfloat16), fw_ref[...],
                     preferred_element_type=jnp.float32) + fb_ref[...]
    o_ref[...] = logits.reshape(1, 1, Npad)


def fused_forward(x_nhwc, conv_w, conv_b, fc_w_pad, fc_b_pad):
    """x_nhwc: (B,H,W,Cin) f32; conv_w: (9,Cin,Cout) bf16; fc_w_pad: (Cout,NPAD) bf16."""
    B, H, W, Cin = x_nhwc.shape
    Cout = conv_w.shape[2]
    Npad = fc_w_pad.shape[1]
    xp = jnp.pad(x_nhwc, ((0, 0), (1, 1), (1, 1), (0, 0)))     # 'same' padding

    kern = functools.partial(_fused_kernel, H=H, W=W, Cin=Cin, Cout=Cout, Npad=Npad)
    out = pl.pallas_call(
        kern,
        out_shape=jax.ShapeDtypeStruct((B, 1, Npad), jnp.float32),
        grid_spec=pltpu.PrefetchScalarGridSpec(
            num_scalar_prefetch=0,
            grid=(B,),
            in_specs=[
                pl.BlockSpec((1, H + 2, W + 2, Cin), lambda b: (b, 0, 0, 0)),
                pl.BlockSpec((9, Cin, Cout), lambda b: (0, 0, 0)),
                pl.BlockSpec((1, Cout), lambda b: (0, 0)),
                pl.BlockSpec((Cout, Npad), lambda b: (0, 0)),
                pl.BlockSpec((1, Npad), lambda b: (0, 0)),
            ],
            out_specs=pl.BlockSpec((1, 1, Npad), lambda b: (b, 0, 0)),
        ),
        compiler_params=pltpu.CompilerParams(
            dimension_semantics=("parallel",)),   # shard batch across TCs (v7x)
    )(xp, conv_w, conv_b.reshape(1, Cout), fc_w_pad, fc_b_pad.reshape(1, Npad))
    return out[:, 0, :]                                   # (B, NPAD)


# ----------------------------------------------------------------------------
# Parameters & model wrapper (forward pass of BaseModel)
# ----------------------------------------------------------------------------
def init_params(key, cin=3, cout=32, num_classes=10):
    k1, k2, k3, k4 = jax.random.split(key, 4)
    conv_w = (jax.random.normal(k1, (9, cin, cout), jnp.float32) * 0.05
              ).astype(jnp.bfloat16)                       # bf16 MXU operand
    conv_b = jax.random.normal(k2, (cout,), jnp.float32) * 0.01
    fc_w = jax.random.normal(k3, (cout, num_classes), jnp.float32) * 0.05
    fc_b = jax.random.normal(k4, (num_classes,), jnp.float32) * 0.01
    # zero-pad the head to 128 output columns -> lane-dense final store
    fc_w_pad = jnp.zeros((cout, NPAD), jnp.bfloat16
                         ).at[:, :num_classes].set(fc_w.astype(jnp.bfloat16))
    fc_b_pad = jnp.zeros((NPAD,), jnp.float32).at[:num_classes].set(fc_b)
    return dict(conv_w=conv_w, conv_b=conv_b, fc_w_pad=fc_w_pad, fc_b_pad=fc_b_pad)


@functools.partial(jax.jit, static_argnames="num_classes")
def base_model_forward(params, x_nchw, *, num_classes):
    # NCHW (PyTorch) -> NHWC for the TPU kernel
    x = jnp.transpose(x_nchw, (0, 2, 3, 1)).astype(jnp.float32)
    logits_pad = fused_forward(x, params["conv_w"], params["conv_b"],
                               params["fc_w_pad"], params["fc_b_pad"])
    return logits_pad[:, :num_classes]                     # drop padded columns


if __name__ == "__main__":
    key = jax.random.PRNGKey(0)
    kx, kp = jax.random.split(key)
    B, C, H, W = 2, 3, 16, 16          # small NCHW image batch
    num_classes = 10
    x = jax.random.normal(kx, (B, C, H, W), jnp.float32)
    params = init_params(kp, cin=C, cout=32, num_classes=num_classes)

    out = base_model_forward(params, x, num_classes=num_classes)
    out = jax.block_until_ready(out)
    assert out.shape == (B, num_classes)
    assert jnp.all(jnp.isfinite(out))
    print("KERNEL_OK")
</pallas_src>

<mosaic_0001>
module attributes {stable_mosaic.version = 11 : i64} {
  func.func @_fused_kernel(%arg0: i32, %arg1: memref<1x18x18x3xf32, #tpu.memory_space<vmem>>, %arg2: memref<9x3x32xbf16, #tpu.memory_space<vmem>>, %arg3: memref<1x32xf32, #tpu.memory_space<vmem>>, %arg4: memref<32x128xbf16, #tpu.memory_space<vmem>>, %arg5: memref<1x128xf32, #tpu.memory_space<vmem>>, %arg6: memref<1x1x128xf32, #tpu.memory_space<vmem>>) attributes {dimension_semantics = [#tpu.dimension_semantics<parallel>], iteration_bounds = array<i64: 2>, scalar_prefetch = 0 : i64, scratch_operands = 0 : i64, tpu.core_type = #tpu.core_type<tc>, window_params = [{transform_indices = @transform_0, window_bounds = array<i64: 1, 18, 18, 3>}, {pipeline_mode = #tpu.pipeline_mode<synchronous>, transform_indices = @transform_1, window_bounds = array<i64: 9, 3, 32>}, {pipeline_mode = #tpu.pipeline_mode<synchronous>, transform_indices = @transform_2, window_bounds = array<i64: 1, 32>}, {pipeline_mode = #tpu.pipeline_mode<synchronous>, transform_indices = @transform_3, window_bounds = array<i64: 32, 128>}, {pipeline_mode = #tpu.pipeline_mode<synchronous>, transform_indices = @transform_4, window_bounds = array<i64: 1, 128>}, {transform_indices = @transform_5, window_bounds = array<i64: 1, 1, 128>}]} {
    %c0 = arith.constant 0 : index
    %c0_0 = arith.constant 0 : index
    %c0_1 = arith.constant 0 : index
    %c0_2 = arith.constant 0 : index
    %0 = vector.load %arg1[%c0, %c0_0, %c0_1, %c0_2] : memref<1x18x18x3xf32, #tpu.memory_space<vmem>>, vector<1x18x18x3xf32>
    %1 = vector.shape_cast %0 : vector<1x18x18x3xf32> to vector<18x18x3xf32>
    %cst = arith.constant 0.000000e+00 : f32
    %2 = vector.broadcast %cst : f32 to vector<256x32xf32>
    %3 = vector.extract_strided_slice %1 {offsets = [0, 0, 0], sizes = [16, 16, 3], strides = [1, 1, 1]} : vector<18x18x3xf32> to vector<16x16x3xf32>
    %4 = vector.shape_cast %3 : vector<16x16x3xf32> to vector<256x3xf32>
    %5 = arith.truncf %4 : vector<256x3xf32> to vector<256x3xbf16>
    %c0_3 = arith.constant 0 : index
    %c0_4 = arith.constant 0 : index
    %c0_5 = arith.constant 0 : index
    %6 = vector.load %arg2[%c0_3, %c0_4, %c0_5] : memref<9x3x32xbf16, #tpu.memory_space<vmem>>, vector<1x3x32xbf16>
    %7 = vector.shape_cast %6 : vector<1x3x32xbf16> to vector<3x32xbf16>
    %cst_6 = arith.constant dense<0.000000e+00> : vector<256x32xf32>
    %8 = tpu.matmul %5, %7, %cst_6 {dimension_numbers = #tpu.dot_dimension_numbers<[1], [0], [0], [1], [0, 0, 1, 1], [], []>} : vector<256x3xbf16>, vector<3x32xbf16>, vector<256x32xf32> -> vector<256x32xf32>
    %9 = arith.addf %2, %8 : vector<256x32xf32>
    %10 = vector.extract_strided_slice %1 {offsets = [0, 1, 0], sizes = [16, 16, 3], strides = [1, 1, 1]} : vector<18x18x3xf32> to vector<16x16x3xf32>
    %11 = vector.shape_cast %10 : vector<16x16x3xf32> to vector<256x3xf32>
    %12 = arith.truncf %11 : vector<256x3xf32> to vector<256x3xbf16>
    %c1 = arith.constant 1 : index
    %c0_7 = arith.constant 0 : index
    %c0_8 = arith.constant 0 : index
    %13 = vector.load %arg2[%c1, %c0_7, %c0_8] : memref<9x3x32xbf16, #tpu.memory_space<vmem>>, vector<1x3x32xbf16>
    %14 = vector.shape_cast %13 : vector<1x3x32xbf16> to vector<3x32xbf16>
    %cst_9 = arith.constant dense<0.000000e+00> : vector<256x32xf32>
    %15 = tpu.matmul %12, %14, %cst_9 {dimension_numbers = #tpu.dot_dimension_numbers<[1], [0], [0], [1], [0, 0, 1, 1], [], []>} : vector<256x3xbf16>, vector<3x32xbf16>, vector<256x32xf32> -> vector<256x32xf32>
    %16 = arith.addf %9, %15 : vector<256x32xf32>
    %17 = vector.extract_strided_slice %1 {offsets = [0, 2, 0], sizes = [16, 16, 3], strides = [1, 1, 1]} : vector<18x18x3xf32> to vector<16x16x3xf32>
    %18 = vector.shape_cast %17 : vector<16x16x3xf32> to vector<256x3xf32>
    %19 = arith.truncf %18 : vector<256x3xf32> to vector<256x3xbf16>
    %c2 = arith.constant 2 : index
    %c0_10 = arith.constant 0 : index
    %c0_11 = arith.constant 0 : index
    %20 = vector.load %arg2[%c2, %c0_10, %c0_11] : memref<9x3x32xbf16, #tpu.memory_space<vmem>>, vector<1x3x32xbf16>
    %21 = vector.shape_cast %20 : vector<1x3x32xbf16> to vector<3x32xbf16>
    %cst_12 = arith.constant dense<0.000000e+00> : vector<256x32xf32>
    %22 = tpu.matmul %19, %21, %cst_12 {dimension_numbers = #tpu.dot_dimension_numbers<[1], [0], [0], [1], [0, 0, 1, 1], [], []>} : vector<256x3xbf16>, vector<3x32xbf16>, vector<256x32xf32> -> vector<256x32xf32>
    %23 = arith.addf %16, %22 : vector<256x32xf32>
    %24 = vector.extract_strided_slice %1 {offsets = [1, 0, 0], sizes = [16, 16, 3], strides = [1, 1, 1]} : vector<18x18x3xf32> to vector<16x16x3xf32>
    %25 = vector.shape_cast %24 : vector<16x16x3xf32> to vector<256x3xf32>
    %26 = arith.truncf %25 : vector<256x3xf32> to vector<256x3xbf16>
    %c3 = arith.constant 3 : index
    %c0_13 = arith.constant 0 : index
    %c0_14 = arith.constant 0 : index
    %27 = vector.load %arg2[%c3, %c0_13, %c0_14] : memref<9x3x32xbf16, #tpu.memory_space<vmem>>, vector<1x3x32xbf16>
    %28 = vector.shape_cast %27 : vector<1x3x32xbf16> to vector<3x32xbf16>
    %cst_15 = arith.constant dense<0.000000e+00> : vector<256x32xf32>
    %29 = tpu.matmul %26, %28, %cst_15 {dimension_numbers = #tpu.dot_dimension_numbers<[1], [0], [0], [1], [0, 0, 1, 1], [], []>} : vector<256x3xbf16>, vector<3x32xbf16>, vector<256x32xf32> -> vector<256x32xf32>
    %30 = arith.addf %23, %29 : vector<256x32xf32>
    %31 = vector.extract_strided_slice %1 {offsets = [1, 1, 0], sizes = [16, 16, 3], strides = [1, 1, 1]} : vector<18x18x3xf32> to vector<16x16x3xf32>
    %32 = vector.shape_cast %31 : vector<16x16x3xf32> to vector<256x3xf32>
    %33 = arith.truncf %32 : vector<256x3xf32> to vector<256x3xbf16>
    %c4 = arith.constant 4 : index
    %c0_16 = arith.constant 0 : index
    %c0_17 = arith.constant 0 : index
    %34 = vector.load %arg2[%c4, %c0_16, %c0_17] : memref<9x3x32xbf16, #tpu.memory_space<vmem>>, vector<1x3x32xbf16>
    %35 = vector.shape_cast %34 : vector<1x3x32xbf16> to vector<3x32xbf16>
    %cst_18 = arith.constant dense<0.000000e+00> : vector<256x32xf32>
    %36 = tpu.matmul %33, %35, %cst_18 {dimension_numbers = #tpu.dot_dimension_numbers<[1], [0], [0], [1], [0, 0, 1, 1], [], []>} : vector<256x3xbf16>, vector<3x32xbf16>, vector<256x32xf32> -> vector<256x32xf32>
    %37 = arith.addf %30, %36 : vector<256x32xf32>
    %38 = vector.extract_strided_slice %1 {offsets = [1, 2, 0], sizes = [16, 16, 3], strides = [1, 1, 1]} : vector<18x18x3xf32> to vector<16x16x3xf32>
    %39 = vector.shape_cast %38 : vector<16x16x3xf32> to vector<256x3xf32>
    %40 = arith.truncf %39 : vector<256x3xf32> to vector<256x3xbf16>
    %c5 = arith.constant 5 : index
    %c0_19 = arith.constant 0 : index
    %c0_20 = arith.constant 0 : index
    %41 = vector.load %arg2[%c5, %c0_19, %c0_20] : memref<9x3x32xbf16, #tpu.memory_space<vmem>>, vector<1x3x32xbf16>
    %42 = vector.shape_cast %41 : vector<1x3x32xbf16> to vector<3x32xbf16>
    %cst_21 = arith.constant dense<0.000000e+00> : vector<256x32xf32>
    %43 = tpu.matmul %40, %42, %cst_21 {dimension_numbers = #tpu.dot_dimension_numbers<[1], [0], [0], [1], [0, 0, 1, 1], [], []>} : vector<256x3xbf16>, vector<3x32xbf16>, vector<256x32xf32> -> vector<256x32xf32>
    %44 = arith.addf %37, %43 : vector<256x32xf32>
    %45 = vector.extract_strided_slice %1 {offsets = [2, 0, 0], sizes = [16, 16, 3], strides = [1, 1, 1]} : vector<18x18x3xf32> to vector<16x16x3xf32>
    %46 = vector.shape_cast %45 : vector<16x16x3xf32> to vector<256x3xf32>
    %47 = arith.truncf %46 : vector<256x3xf32> to vector<256x3xbf16>
    %c6 = arith.constant 6 : index
    %c0_22 = arith.constant 0 : index
    %c0_23 = arith.constant 0 : index
    %48 = vector.load %arg2[%c6, %c0_22, %c0_23] : memref<9x3x32xbf16, #tpu.memory_space<vmem>>, vector<1x3x32xbf16>
    %49 = vector.shape_cast %48 : vector<1x3x32xbf16> to vector<3x32xbf16>
    %cst_24 = arith.constant dense<0.000000e+00> : vector<256x32xf32>
    %50 = tpu.matmul %47, %49, %cst_24 {dimension_numbers = #tpu.dot_dimension_numbers<[1], [0], [0], [1], [0, 0, 1, 1], [], []>} : vector<256x3xbf16>, vector<3x32xbf16>, vector<256x32xf32> -> vector<256x32xf32>
    %51 = arith.addf %44, %50 : vector<256x32xf32>
    %52 = vector.extract_strided_slice %1 {offsets = [2, 1, 0], sizes = [16, 16, 3], strides = [1, 1, 1]} : vector<18x18x3xf32> to vector<16x16x3xf32>
    %53 = vector.shape_cast %52 : vector<16x16x3xf32> to vector<256x3xf32>
    %54 = arith.truncf %53 : vector<256x3xf32> to vector<256x3xbf16>
    %c7 = arith.constant 7 : index
    %c0_25 = arith.constant 0 : index
    %c0_26 = arith.constant 0 : index
    %55 = vector.load %arg2[%c7, %c0_25, %c0_26] : memref<9x3x32xbf16, #tpu.memory_space<vmem>>, vector<1x3x32xbf16>
    %56 = vector.shape_cast %55 : vector<1x3x32xbf16> to vector<3x32xbf16>
    %cst_27 = arith.constant dense<0.000000e+00> : vector<256x32xf32>
    %57 = tpu.matmul %54, %56, %cst_27 {dimension_numbers = #tpu.dot_dimension_numbers<[1], [0], [0], [1], [0, 0, 1, 1], [], []>} : vector<256x3xbf16>, vector<3x32xbf16>, vector<256x32xf32> -> vector<256x32xf32>
    %58 = arith.addf %51, %57 : vector<256x32xf32>
    %59 = vector.extract_strided_slice %1 {offsets = [2, 2, 0], sizes = [16, 16, 3], strides = [1, 1, 1]} : vector<18x18x3xf32> to vector<16x16x3xf32>
    %60 = vector.shape_cast %59 : vector<16x16x3xf32> to vector<256x3xf32>
    %61 = arith.truncf %60 : vector<256x3xf32> to vector<256x3xbf16>
    %c8 = arith.constant 8 : index
    %c0_28 = arith.constant 0 : index
    %c0_29 = arith.constant 0 : index
    %62 = vector.load %arg2[%c8, %c0_28, %c0_29] : memref<9x3x32xbf16, #tpu.memory_space<vmem>>, vector<1x3x32xbf16>
    %63 = vector.shape_cast %62 : vector<1x3x32xbf16> to vector<3x32xbf16>
    %cst_30 = arith.constant dense<0.000000e+00> : vector<256x32xf32>
    %64 = tpu.matmul %61, %63, %cst_30 {dimension_numbers = #tpu.dot_dimension_numbers<[1], [0], [0], [1], [0, 0, 1, 1], [], []>} : vector<256x3xbf16>, vector<3x32xbf16>, vector<256x32xf32> -> vector<256x32xf32>
    %65 = arith.addf %58, %64 : vector<256x32xf32>
    %c0_31 = arith.constant 0 : index
    %c0_32 = arith.constant 0 : index
    %66 = vector.load %arg3[%c0_31, %c0_32] : memref<1x32xf32, #tpu.memory_space<vmem>>, vector<1x32xf32>
    %67 = vector.broadcast %66 : vector<1x32xf32> to vector<256x32xf32>
    %68 = arith.addf %65, %67 : vector<256x32xf32>
    %cst_33 = arith.constant 0.000000e+00 : f32
    %69 = vector.broadcast %cst_33 : f32 to vector<256x32xf32>
    %70 = arith.maximumf %68, %69 : vector<256x32xf32>
    %cst_34 = arith.constant dense<0.000000e+00> : vector<32xf32>
    %71 = vector.multi_reduction <add>, %70, %cst_34 [0] : vector<256x32xf32> to vector<32xf32>
    %72 = vector.shape_cast %71 : vector<32xf32> to vector<1x32xf32>
    %cst_35 = arith.constant 3.906250e-03 : f32
    %73 = vector.broadcast %cst_35 : f32 to vector<1x32xf32>
    %74 = arith.mulf %72, %73 : vector<1x32xf32>
    %75 = arith.truncf %74 : vector<1x32xf32> to vector<1x32xbf16>
    %c0_36 = arith.constant 0 : index
    %c0_37 = arith.constant 0 : index
    %76 = vector.load %arg4[%c0_36, %c0_37] : memref<32x128xbf16, #tpu.memory_space<vmem>>, vector<32x128xbf16>
    %cst_38 = arith.constant dense<0.000000e+00> : vector<1x128xf32>
    %77 = tpu.matmul %75, %76, %cst_38 {dimension_numbers = #tpu.dot_dimension_numbers<[1], [0], [0], [1], [0, 0, 1, 1], [], []>} : vector<1x32xbf16>, vector<32x128xbf16>, vector<1x128xf32> -> vector<1x128xf32>
    %c0_39 = arith.constant 0 : index
    %c0_40 = arith.constant 0 : index
    %78 = vector.load %arg5[%c0_39, %c0_40] : memref<1x128xf32, #tpu.memory_space<vmem>>, vector<1x128xf32>
    %79 = arith.addf %77, %78 : vector<1x128xf32>
    %80 = vector.shape_cast %79 : vector<1x128xf32> to vector<1x1x128xf32>
    %c0_41 = arith.constant 0 : index
    %c0_42 = arith.constant 0 : index
    %c0_43 = arith.constant 0 : index
    %81 = vector.load %arg6[%c0_41, %c0_42, %c0_43] : memref<1x1x128xf32, #tpu.memory_space<vmem>>, vector<1x1x128xf32>
    tpu.vector_store %arg6[%c0_41, %c0_42, %c0_43], %80 {strides = array<i32>} : memref<1x1x128xf32, #tpu.memory_space<vmem>>, vector<1x1x128xf32>,
    return
  }
  func.func @transform_0(%arg0: i32) -> (i32, i32, i32, i32) {
    %c0_i32 = arith.constant 0 : i32
    %c0_i32_0 = arith.constant 0 : i32
    %c0_i32_1 = arith.constant 0 : i32
    %c0_i32_2 = arith.constant 0 : i32
    return %arg0, %c0_i32, %c0_i32_0, %c0_i32_1 : i32, i32, i32, i32
  }
  func.func @transform_1(%arg0: i32) -> (i32, i32, i32) {
    %c0_i32 = arith.constant 0 : i32
    %c0_i32_0 = arith.constant 0 : i32
    %c0_i32_1 = arith.constant 0 : i32
    %c0_i32_2 = arith.constant 0 : i32
    return %c0_i32, %c0_i32_0, %c0_i32_1 : i32, i32, i32
  }
  func.func @transform_2(%arg0: i32) -> (i32, i32) {
    %c0_i32 = arith.constant 0 : i32
    %c0_i32_0 = arith.constant 0 : i32
    %c0_i32_1 = arith.constant 0 : i32
    return %c0_i32, %c0_i32_0 : i32, i32
  }
  func.func @transform_3(%arg0: i32) -> (i32, i32) {
    %c0_i32 = arith.constant 0 : i32
    %c0_i32_0 = arith.constant 0 : i32
    %c0_i32_1 = arith.constant 0 : i32
    return %c0_i32, %c0_i32_0 : i32, i32
  }
  func.func @transform_4(%arg0: i32) -> (i32, i32) {
    %c0_i32 = arith.constant 0 : i32
    %c0_i32_0 = arith.constant 0 : i32
    %c0_i32_1 = arith.constant 0 : i32
    return %c0_i32, %c0_i32_0 : i32, i32
  }
  func.func @transform_5(%arg0: i32) -> (i32, i32, i32) {
    %c0_i32 = arith.constant 0 : i32
    %c0_i32_0 = arith.constant 0 : i32
    %c0_i32_1 = arith.constant 0 : i32
    return %arg0, %c0_i32, %c0_i32_0 : i32, i32, i32
  }
}

</mosaic_0001>

<llo_original>
// kernel: base_model_forward.1
$region0: #{base_model_forward.1}
  #allocation0 [shape = 'u32[]', space=smem, size = 0x4, offset = 0x4, fixed_abs, tag = 'smem constant byte address 0x4 - core index']
  #allocation1 [shape = 'u32[144,128]{1,0:T(1,128)}', space=vmem, size = 0x12000, scoped, tag = 'internal scratch']
  %s0 = inlined_call_operand.vmem [shape: f32[2,18,18,3], index: 0, kind: input, shape index: {}]
  %s1 = inlined_call_operand.vmem [shape: bf16[9,3,32], index: 1, kind: input, shape index: {}]
  %s2 = inlined_call_operand.vmem [shape: f32[1,32], index: 2, kind: input, shape index: {}]
  %s3 = inlined_call_operand.vmem [shape: bf16[32,128], index: 3, kind: input, shape index: {}]
  %s4 = inlined_call_operand.vmem [shape: f32[1,128], index: 4, kind: input, shape index: {}]
  %s5 = inlined_call_operand.hbm [shape: f32[2,1,128], index: 5, kind: output, shape index: {}]
  %s6 = sld [smem:[#allocation0]]
  $region53: #{base_model_forward.1} parent=0
    _
  %s8 = ssub.s32 1, %s6
  %s9 = scalar_select 0, %s8, %s6
  $region1: #{base_model_forward.1} parent=0
    #allocation2 [shape = 'u8[1024]{0}', space=vmem, size = 0x400, scoped, tag = 'output window, operand 0']
    #allocation3 [shape = 's32[2]{0}', space=sflag, size = 0x8, scoped, tag = 'scoped memory for base_model_forward.1']
    %10 = vsyncpa [#allocation3], 0
    %s11 = scalar_lea.sflag [#allocation3], 1
    %12 = vsyncpa %s11, 0
    loop: start=0, step=1, limit=4
    $region2: #{base_model_forward.1} parent=1 // loop_pre_header
      _
    $region3: #{base_model_forward.1} parent=1 // loop_header
      %s14 = sphi 0, %s18
      %p15 = scmp.ge.s32.totalorder %s14, 4
      %s24 = sphi 0, %s26
      %s27 = sphi 0, %s24
      %s28 = sphi 0, %s27
      %s44 = sphi 0, %s28
      %s48 = sphi 0, %s48
      %s50 = sphi 0, %s48
      %s51 = sphi 0, %s50
      %s65 = sphi 0, %s51
      %s69 = sphi 0, %s69
      %s71 = sphi 0, %s69
      %s72 = sphi 0, %s71
      %s86 = sphi 0, %s72
      %s90 = sphi 0, %s90
      %s92 = sphi 0, %s90
      %s93 = sphi 0, %s92
      %s107 = sphi 0, %s93
      %s111 = sphi 0, %s111
      %s113 = sphi 0, %s111
      %s114 = sphi 0, %s113
      %s128 = sphi 0, %s114
      %s134 = sphi 0, %s136
      %s137 = sphi 0, %s134
      %s138 = sphi 0, %s137
      %s154 = sphi 0, %s138
    $region4: #{base_model_forward.1} parent=1 // loop_header_branch
      %17 = sbr.rel (%p15) target = $region8
    $region5: #{base_model_forward.1} parent=1 // loop_body
      %s19 = ssub.s32 %s14, 1
      %s20 = ssub.s32 %s14, 2
      %s21 = sadd.s32 %s14, 1
      %s22 = ssub.s32 %s14, %s21
      %p23 = scmp.eq.s32.totalorder %s22, 0
      %s25 = sadd.s32 %s24, 1
      %s26 = scalar_select %p23, %s24, %s25
      %p29 = pneg %p23
      %p30 = scmp.eq.s32.totalorder %s14, 1
      %p31 = por %p29, %p30
      %p32 = scmp.ne.s32.totalorder %s24, %s27
      %p33 = scmp.eq.s32.totalorder %s14, 0
      %p34 = por %p32, %p33
      %p35 = scmp.ne.s32.totalorder %s24, %s27
      %p36 = scmp.eq.s32.totalorder %s19, 1
      %p37 = por %p35, %p36
      %p38 = scmp.ne.s32.totalorder %s27, %s28
      %p39 = scmp.eq.s32.totalorder %s19, 0
      %p40 = por %p38, %p39
      %p41 = scmp.ne.s32.totalorder %s27, %s28
      %p42 = scmp.eq.s32.totalorder %s20, 1
      %p43 = por %p41, %p42
      %p45 = scmp.ne.s32.totalorder %s28, %s44
      %p46 = scmp.eq.s32.totalorder %s20, 0
      %p47 = por %p45, %p46
      %s49 = sadd.s32 %s48, 1
      %p52 = scmp.eq.s32.totalorder %s14, 1
      %p53 = scmp.ne.s32.totalorder %s48, %s50
      %p54 = scmp.eq.s32.totalorder %s14, 0
      %p55 = por %p53, %p54
      %p56 = scmp.ne.s32.totalorder %s48, %s50
      %p57 = scmp.eq.s32.totalorder %s19, 1
      %p58 = por %p56, %p57
      %p59 = scmp.ne.s32.totalorder %s50, %s51
      %p60 = scmp.eq.s32.totalorder %s19, 0
      %p61 = por %p59, %p60
      %p62 = scmp.ne.s32.totalorder %s50, %s51
      %p63 = scmp.eq.s32.totalorder %s20, 1
      %p64 = por %p62, %p63
      %p66 = scmp.ne.s32.totalorder %s51, %s65
      %p67 = scmp.eq.s32.totalorder %s20, 0
      %p68 = por %p66, %p67
      %s70 = sadd.s32 %s69, 1
      %p73 = scmp.eq.s32.totalorder %s14, 1
      %p74 = scmp.ne.s32.totalorder %s69, %s71
      %p75 = scmp.eq.s32.totalorder %s14, 0
      %p76 = por %p74, %p75
      %p77 = scmp.ne.s32.totalorder %s69, %s71
      %p78 = scmp.eq.s32.totalorder %s19, 1
      %p79 = por %p77, %p78
      %p80 = scmp.ne.s32.totalorder %s71, %s72
      %p81 = scmp.eq.s32.totalorder %s19, 0
      %p82 = por %p80, %p81
      %p83 = scmp.ne.s32.totalorder %s71, %s72
      %p84 = scmp.eq.s32.totalorder %s20, 1
      %p85 = por %p83, %p84
      %p87 = scmp.ne.s32.totalorder %s72, %s86
      %p88 = scmp.eq.s32.totalorder %s20, 0
      %p89 = por %p87, %p88
      %s91 = sadd.s32 %s90, 1
      %p94 = scmp.eq.s32.totalorder %s14, 1
      %p95 = scmp.ne.s32.totalorder %s90, %s92
      %p96 = scmp.eq.s32.totalorder %s14, 0
      %p97 = por %p95, %p96
      %p98 = scmp.ne.s32.totalorder %s90, %s92
      %p99 = scmp.eq.s32.totalorder %s19, 1
      %p100 = por %p98, %p99
      %p101 = scmp.ne.s32.totalorder %s92, %s93
      %p102 = scmp.eq.s32.totalorder %s19, 0
      %p103 = por %p101, %p102
      %p104 = scmp.ne.s32.totalorder %s92, %s93
      %p105 = scmp.eq.s32.totalorder %s20, 1
      %p106 = por %p104, %p105
      %p108 = scmp.ne.s32.totalorder %s93, %s107
      %p109 = scmp.eq.s32.totalorder %s20, 0
      %p110 = por %p108, %p109
      %s112 = sadd.s32 %s111, 1
      %p115 = scmp.eq.s32.totalorder %s14, 1
      %p116 = scmp.ne.s32.totalorder %s111, %s113
      %p117 = scmp.eq.s32.totalorder %s14, 0
      %p118 = por %p116, %p117
      %p119 = scmp.ne.s32.totalorder %s111, %s113
      %p120 = scmp.eq.s32.totalorder %s19, 1
      %p121 = por %p119, %p120
      %p122 = scmp.ne.s32.totalorder %s113, %s114
      %p123 = scmp.eq.s32.totalorder %s19, 0
      %p124 = por %p122, %p123
      %p125 = scmp.ne.s32.totalorder %s113, %s114
      %p126 = scmp.eq.s32.totalorder %s20, 1
      %p127 = por %p125, %p126
      %p129 = scmp.ne.s32.totalorder %s114, %s128
      %p130 = scmp.eq.s32.totalorder %s20, 0
      %p131 = por %p129, %p130
      %s132 = ssub.s32 %s14, %s21
      %p133 = scmp.eq.s32.totalorder %s132, 0
      %s135 = sadd.s32 %s134, 1
      %s136 = scalar_select %p133, %s134, %s135
      %p139 = pneg %p133
      %p140 = scmp.eq.s32.totalorder %s14, 1
      %p141 = por %p139, %p140
      %p142 = scmp.ne.s32.totalorder %s134, %s137
      %p143 = scmp.eq.s32.totalorder %s14, 0
      %p144 = por %p142, %p143
      %p145 = scmp.ne.s32.totalorder %s134, %s137
      %p146 = scmp.eq.s32.totalorder %s19, 1
      %p147 = por %p145, %p146
      %p148 = scmp.ne.s32.totalorder %s137, %s138
      %p149 = scmp.eq.s32.totalorder %s19, 0
      %p150 = por %p148, %p149
      %p151 = scmp.ne.s32.totalorder %s137, %s138
      %p152 = scmp.eq.s32.totalorder %s20, 1
      %p153 = por %p151, %p152
      %p155 = scmp.ne.s32.totalorder %s138, %s154
      %p156 = scmp.eq.s32.totalorder %s20, 0
      %p157 = por %p155, %p156
      %p158 = scmp.le.s32.totalorder 1, %s14
      %p159 = scmp.lt.s32.totalorder %s14, 3
      %p160 = pnand %p158, %p159
      %p161 = pneg %p160
      // Predicated region
      $region9: #{base_model_forward.1} parent=5 // pred_check
        _
      $region10: #{base_model_forward.1} parent=5 // pred_check_branch
        %163 = sbr.rel (%p160) target = $region12
      $region11: #{base_model_forward.1} parent=5 // pred_region
        %s164 = ssub.s32 %s14, 1
        // Predicated region
        $region13: #{base_model_forward.1} parent=11 // pred_check
          %p165 = pneg %p61
        $region14: #{base_model_forward.1} parent=11 // pred_check_branch
          %167 = sbr.rel (%p165) target = $region16
        $region15: #{base_model_forward.1} parent=11 // pred_region
          _
        $region16: #{base_model_forward.1} parent=11 // pred_fallthru
          _
        // Predicated region
        $region17: #{base_model_forward.1} parent=11 // pred_check
          %p168 = pneg %p82
        $region18: #{base_model_forward.1} parent=11 // pred_check_branch
          %170 = sbr.rel (%p168) target = $region20
        $region19: #{base_model_forward.1} parent=11 // pred_region
          _
        $region20: #{base_model_forward.1} parent=11 // pred_fallthru
          _
        // Predicated region
        $region21: #{base_model_forward.1} parent=11 // pred_check
          %p171 = pneg %p103
        $region22: #{base_model_forward.1} parent=11 // pred_check_branch
          %173 = sbr.rel (%p171) target = $region24
        $region23: #{base_model_forward.1} parent=11 // pred_region
          _
        $region24: #{base_model_forward.1} parent=11 // pred_fallthru
          _
        // Predicated region
        $region25: #{base_model_forward.1} parent=11 // pred_check
          %p174 = pneg %p124
        $region26: #{base_model_forward.1} parent=11 // pred_check_branch
          %176 = sbr.rel (%p174) target = $region28
        $region27: #{base_model_forward.1} parent=11 // pred_region
          _
        $region28: #{base_model_forward.1} parent=11 // pred_fallthru
          _
      $region12: #{base_model_forward.1} parent=5 // pred_fallthru
        _
      %p177 = scmp.lt.s32.totalorder %s14, 2
      // Predicated region
      $region29: #{base_model_forward.1} parent=5 // pred_check
        %p178 = pneg %p177
      $region30: #{base_model_forward.1} parent=5 // pred_check_branch
        %180 = sbr.rel (%p178) target = $region32
      $region31: #{base_model_forward.1} parent=5 // pred_region
        // Predicated region
        $region33: #{base_model_forward.1} parent=31 // pred_check
          %p181 = pneg %p34
        $region34: #{base_model_forward.1} parent=31 // pred_check_branch
          %183 = sbr.rel (%p181) target = $region36
        $region35: #{base_model_forward.1} parent=31 // pred_region
          %p184 = scmp.lt.s32.totalorder %s14, 1
          %s185 = scalar_select %p184, %s14, 1
          %s186 = smul.addr %s185, 54
          %s187 = smul.addr %s186, 8
          %s188 = scalar_lea.vmem %s0, %s187
        $region36: #{base_model_forward.1} parent=31 // pred_fallthru
          _
      $region32: #{base_model_forward.1} parent=5 // pred_fallthru
        _
      %p189 = scmp.le.s32.totalorder 1, %s14
      %p190 = scmp.lt.s32.totalorder %s14, 3
      %p191 = pnand %p189, %p190
      %p192 = pneg %p191
      // Predicated region
      $region37: #{base_model_forward.1} parent=5 // pred_check
        _
      $region38: #{base_model_forward.1} parent=5 // pred_check_branch
        %194 = sbr.rel (%p191) target = $region40
      $region39: #{base_model_forward.1} parent=5 // pred_region
        %s195 = ssub.s32 %s14, 1
        %p196 = scmp.lt.s32.totalorder %s19, 1
        %s197 = scalar_select %p196, %s19, 1
        %s198 = smul.addr %s197, 54
        %s199 = smul.addr %s198, 8
        %s200 = scalar_lea.vmem %s0, %s199
        %p201 = pneg %p40
        %p202 = pneg %p37
        %p203 = pneg %p61
        %p204 = pneg %p58
        %p205 = pneg %p82
        %p206 = pneg %p79
        %p207 = pneg %p103
        %p208 = pneg %p100
        %p209 = pneg %p124
        %p210 = pneg %p121
        %p211 = pneg %p150
        %p212 = pneg %p147
        %s213 = sand.u32 %s137, 1
        %s214 = scalar_lea.sflag [#allocation3], %s213
        %s215 = sand.u32 %s137, 1
        %s216 = scalar_lea.vmem [#allocation2], %s215
        %p217 = scmp.lt.s32.totalorder %s19, 1
        %s218 = scalar_select %p217, %s19, 1
        %s219 = smul.addr %s218, 54
        %s220 = smul.addr %s219, 8
        %s221 = scalar_lea.vmem %s0, %s220
        %v223 = vld [vmem:[%s221] sm:$0xff]
        %v224 = vld [vmem:[%s221 + $0x8] sm:$0xff]
        %v225 = vld [vmem:[%s221 + $0x10] sm:$0x3]
        %v226 = vld [vmem:[%s221 + $0x18] sm:$0xff]
        %v227 = vld [vmem:[%s221 + $0x20] sm:$0xff]
        %v228 = vld [vmem:[%s221 + $0x28] sm:$0x3]
        %v229 = vld [vmem:[%s221 + $0x30] sm:$0xff]
        %v230 = vld [vmem:[%s221 + $0x38] sm:$0xff]
        %v231 = vld [vmem:[%s221 + $0x40] sm:$0x3]
        %v232 = vld [vmem:[%s221 + $0x48] sm:$0xff]
        %v233 = vld [vmem:[%s221 + $0x50] sm:$0xff]
        %v234 = vld [vmem:[%s221 + $0x58] sm:$0x3]
        %v235 = vld [vmem:[%s221 + $0x60] sm:$0xff]
        %v236 = vld [vmem:[%s221 + $0x68] sm:$0xff]
        %v237 = vld [vmem:[%s221 + $0x70] sm:$0x3]
        %v238 = vld [vmem:[%s221 + $0x78] sm:$0xff]
        %v239 = vld [vmem:[%s221 + $0x80] sm:$0xff]
        %v240 = vld [vmem:[%s221 + $0x88] sm:$0x3]
        %v241 = vld [vmem:[%s221 + $0x90] sm:$0xff]
        %v242 = vld [vmem:[%s221 + $0x98] sm:$0xff]
        %v243 = vld [vmem:[%s221 + $0xa0] sm:$0x3]
        %v244 = vld [vmem:[%s221 + $0xa8] sm:$0xff]
        %v245 = vld [vmem:[%s221 + $0xb0] sm:$0xff]
        %v246 = vld [vmem:[%s221 + $0xb8] sm:$0x3]
        %v247 = vld [vmem:[%s221 + $0xc0] sm:$0xff]
        %v248 = vld [vmem:[%s221 + $0xc8] sm:$0xff]
        %v249 = vld [vmem:[%s221 + $0xd0] sm:$0x3]
        %v250 = vld [vmem:[%s221 + $0xd8] sm:$0xff]
        %v251 = vld [vmem:[%s221 + $0xe0] sm:$0xff]
        %v252 = vld [vmem:[%s221 + $0xe8] sm:$0x3]
        %v253 = vld [vmem:[%s221 + $0xf0] sm:$0xff]
        %v254 = vld [vmem:[%s221 + $0xf8] sm:$0xff]
        %v255 = vld [vmem:[%s221 + $0x100] sm:$0x3]
        %v256 = vld [vmem:[%s221 + $0x108] sm:$0xff]
        %v257 = vld [vmem:[%s221 + $0x110] sm:$0xff]
        %v258 = vld [vmem:[%s221 + $0x118] sm:$0x3]
        %v259 = vld [vmem:[%s221 + $0x120] sm:$0xff]
        %v260 = vld [vmem:[%s221 + $0x128] sm:$0xff]
        %v261 = vld [vmem:[%s221 + $0x130] sm:$0x3]
        %v262 = vld [vmem:[%s221 + $0x138] sm:$0xff]
        %v263 = vld [vmem:[%s221 + $0x140] sm:$0xff]
        %v264 = vld [vmem:[%s221 + $0x148] sm:$0x3]
        %v265 = vld [vmem:[%s221 + $0x150] sm:$0xff]
        %v266 = vld [vmem:[%s221 + $0x158] sm:$0xff]
        %v267 = vld [vmem:[%s221 + $0x160] sm:$0x3]
        %v268 = vld [vmem:[%s221 + $0x168] sm:$0xff]
        %v269 = vld [vmem:[%s221 + $0x170] sm:$0xff]
        %v270 = vld [vmem:[%s221 + $0x178] sm:$0x3]
        %v271 = vld [vmem:[%s221 + $0x180] sm:$0xff]
        %v272 = vld [vmem:[%s221 + $0x188] sm:$0xff]
        %v273 = vld [vmem:[%s221 + $0x190] sm:$0x3]
        %v274 = vld [vmem:[%s221 + $0x198] sm:$0xff]
        %v275 = vld [vmem:[%s221 + $0x1a0] sm:$0xff]
        %v276 = vld [vmem:[%s221 + $0x1a8] sm:$0x3]
        %v277 = vpack.c.bf16 %v224, %v223
        %v278 = vpack.c.bf16 %v227, %v226
        %v279 = vpack.c.bf16 %v230, %v229
        %v280 = vpack.c.bf16 %v233, %v232
        %v281 = vpack.c.bf16 %v236, %v235
        %v282 = vpack.c.bf16 %v239, %v238
        %v283 = vpack.c.bf16 %v242, %v241
        %v284 = vpack.c.bf16 %v245, %v244
        %v285 = vpack.c.bf16 %v248, %v247
        %v286 = vpack.c.bf16 %v251, %v250
        %v287 = vpack.c.bf16 %v254, %v253
        %v288 = vpack.c.bf16 %v257, %v256
        %v289 = vpack.c.bf16 %v260, %v259
        %v290 = vpack.c.bf16 %v263, %v262
        %v291 = vpack.c.bf16 %v266, %v265
        %v292 = vpack.c.bf16 %v269, %v268
        %v293 = vld [vmem:[%s1] sm:$0x3]
        %vm342 = vcmask 1046528
        %v343 = vrot.slane %v223, 1
        %v344 = vrot.slane %v224, 1
        %v345 = vsel %vm342, %v343, %v344
        %v346 = vrot.slane %v225, 1
        %v347 = vsel %vm342, %v344, %v346
        %v348 = vrot.slane %v226, 1
        %v349 = vrot.slane %v227, 1
        %v350 = vsel %vm342, %v348, %v349
        %v351 = vrot.slane %v228, 1
        %v352 = vsel %vm342, %v349, %v351
        %v353 = vrot.slane %v229, 1
        %v354 = vrot.slane %v230, 1
        %v355 = vsel %vm342, %v353, %v354
        %v356 = vrot.slane %v231, 1
        %v357 = vsel %vm342, %v354, %v356
        %v358 = vrot.slane %v232, 1
        %v359 = vrot.slane %v233, 1
        %v360 = vsel %vm342, %v358, %v359
        %v361 = vrot.slane %v234, 1
        %v362 = vsel %vm342, %v359, %v361
        %v363 = vrot.slane %v235, 1
        %v364 = vrot.slane %v236, 1
        %v365 = vsel %vm342, %v363, %v364
        %v366 = vrot.slane %v237, 1
        %v367 = vsel %vm342, %v364, %v366
        %v368 = vrot.slane %v238, 1
        %v369 = vrot.slane %v239, 1
        %v370 = vsel %vm342, %v368, %v369
        %v371 = vrot.slane %v240, 1
        %v372 = vsel %vm342, %v369, %v371
        %v373 = vrot.slane %v241, 1
        %v374 = vrot.slane %v242, 1
        %v375 = vsel %vm342, %v373, %v374
        %v376 = vrot.slane %v243, 1
        %v377 = vsel %vm342, %v374, %v376
        %v378 = vrot.slane %v244, 1
        %v379 = vrot.slane %v245, 1
        %v380 = vsel %vm342, %v378, %v379
        %v381 = vrot.slane %v246, 1
        %v382 = vsel %vm342, %v379, %v381
        %v383 = vrot.slane %v247, 1
        %v384 = vrot.slane %v248, 1
        %v385 = vsel %vm342, %v383, %v384
        %v386 = vrot.slane %v249, 1
        %v387 = vsel %vm342, %v384, %v386
        %v388 = vrot.slane %v250, 1
        %v389 = vrot.slane %v251, 1
        %v390 = vsel %vm342, %v388, %v389
        %v391 = vrot.slane %v252, 1
        %v392 = vsel %vm342, %v389, %v391
        %v393 = vrot.slane %v253, 1
        %v394 = vrot.slane %v254, 1
        %v395 = vsel %vm342, %v393, %v394
        %v396 = vrot.slane %v255, 1
        %v397 = vsel %vm342, %v394, %v396
        %v398 = vrot.slane %v256, 1
        %v399 = vrot.slane %v257, 1
        %v400 = vsel %vm342, %v398, %v399
        %v401 = vrot.slane %v258, 1
        %v402 = vsel %vm342, %v399, %v401
        %v403 = vrot.slane %v259, 1
        %v404 = vrot.slane %v260, 1
        %v405 = vsel %vm342, %v403, %v404
        %v406 = vrot.slane %v261, 1
        %v407 = vsel %vm342, %v404, %v406
        %v408 = vrot.slane %v262, 1
        %v409 = vrot.slane %v263, 1
        %v410 = vsel %vm342, %v408, %v409
        %v411 = vrot.slane %v264, 1
        %v412 = vsel %vm342, %v409, %v411
        %v413 = vrot.slane %v265, 1
        %v414 = vrot.slane %v266, 1
        %v415 = vsel %vm342, %v413, %v414
        %v416 = vrot.slane %v267, 1
        %v417 = vsel %vm342, %v414, %v416
        %v418 = vrot.slane %v268, 1
        %v419 = vrot.slane %v269, 1
        %v420 = vsel %vm342, %v418, %v419
        %v421 = vrot.slane %v270, 1
        %v422 = vsel %vm342, %v419, %v421
        %v455 = vpack.c.bf16 %v347, %v345
        %v456 = vpack.c.bf16 %v352, %v350
        %v457 = vpack.c.bf16 %v357, %v355
        %v458 = vpack.c.bf16 %v362, %v360
        %v459 = vpack.c.bf16 %v367, %v365
        %v460 = vpack.c.bf16 %v372, %v370
        %v461 = vpack.c.bf16 %v377, %v375
        %v462 = vpack.c.bf16 %v382, %v380
        %v463 = vpack.c.bf16 %v387, %v385
        %v464 = vpack.c.bf16 %v392, %v390
        %v465 = vpack.c.bf16 %v397, %v395
        %v466 = vpack.c.bf16 %v402, %v400
        %v467 = vpack.c.bf16 %v407, %v405
        %v468 = vpack.c.bf16 %v412, %v410
        %v469 = vpack.c.bf16 %v417, %v415
        %v470 = vpack.c.bf16 %v422, %v420
        %s471 = scalar_lea.vmem %s1, 2
        %v472 = vld [vmem:[%s471] sm:$0x3]
        %vm473 = vcmask 23552
        %v475 = vsel %vm473, %v455, 0
        %v478 = vsel %vm473, %v456, 0
        %v481 = vsel %vm473, %v457, 0
        %v484 = vsel %vm473, %v458, 0
        %v487 = vsel %vm473, %v459, 0
        %v490 = vsel %vm473, %v460, 0
        %v493 = vsel %vm473, %v461, 0
        %v496 = vsel %vm473, %v462, 0
        %v499 = vsel %vm473, %v463, 0
        %v502 = vsel %vm473, %v464, 0
        %v505 = vsel %vm473, %v465, 0
        %v508 = vsel %vm473, %v466, 0
        %v511 = vsel %vm473, %v467, 0
        %v514 = vsel %vm473, %v468, 0
        %v517 = vsel %vm473, %v469, 0
        %v520 = vsel %vm473, %v470, 0
        %vm522 = vcmask 1040384
        %vm523 = vcmask 1041408
        %v524 = vsel %vm522, 4294967295, 65535
        %v525 = vsel %vm523, %v524, 0
        %v527 = vand.u32 %v472, %v525
        %529 = vmatprep.subr.bf16.mxu0 0
        %530 = vmatpush1.bf16.msra.mxu0 %v527
        %531 = vmatprep.subr.bf16.mxu0 0
        %532 = vmatpush1.bf16.msra.mxu0 0
        %533 = vmatprep.subr.bf16.mxu0 0
        %534 = vmatpush1.bf16.msra.mxu0 0
        %535 = vmatprep.subr.bf16.mxu0 0
        %536 = vmatpush1.bf16.msra.mxu0 0
        %537 = vmatprep.subr.bf16.mxu0 0
        %538 = vmatpush1.bf16.msra.mxu0 0
        %539 = vmatprep.subr.bf16.mxu0 0
        %540 = vmatpush1.bf16.msra.mxu0 0
        %541 = vmatprep.subr.bf16.mxu0 0
        %542 = vmatpush1.bf16.msra.mxu0 0
        %543 = vmatprep.subr.bf16.mxu0 0
        %544 = vmatpush1.bf16.msra.mxu0 0
        %545 = vmatprep.subr.bf16.mxu0 0
        %546 = vmatpush1.bf16.msra.mxu0 0
        %547 = vmatprep.subr.bf16.mxu0 0
        %548 = vmatpush1.bf16.msra.mxu0 0
        %549 = vmatprep.subr.bf16.mxu0 0
        %550 = vmatpush1.bf16.msra.mxu0 0
        %551 = vmatprep.subr.bf16.mxu0 0
        %552 = vmatpush1.bf16.msra.mxu0 0
        %553 = vmatprep.subr.bf16.mxu0 0
        %554 = vmatpush1.bf16.msra.mxu0 0
        %555 = vmatprep.subr.bf16.mxu0 0
        %556 = vmatpush1.bf16.msra.mxu0 0
        %557 = vmatprep.subr.bf16.mxu0 0
        %558 = vmatpush1.bf16.msra.mxu0 0
        %559 = vmatprep.subr.bf16.mxu0 0
        %560 = vmatpush1.bf16.msra.mxu0 0
        %561 = vmatprep.mubr.bf16.mxu0 0
        %562 = vmatmul.mubr.bf16.gmra.mrb[0].mxu0 %v475
        %v563 = vpop.f32.mrb[0].mxu0
        %v564 = vadd.f32 0.0, %v563
        %v565 = vpop.f32.mrb[0].mxu0
        %v566 = vpop.f32.mrb[0].mxu0
        %v567 = vadd.f32 0.0, %v566
        %v568 = vpop.f32.mrb[0].mxu0
        %569 = vmatprep.mubr.bf16.mxu0 0
        %570 = vmatmul.mubr.bf16.gmra.mrb[0].mxu0 %v478
        %v571 = vpop.f32.mrb[0].mxu0
        %v572 = vadd.f32 0.0, %v571
        %v573 = vpop.f32.mrb[0].mxu0
        %v574 = vpop.f32.mrb[0].mxu0
        %v575 = vadd.f32 0.0, %v574
        %v576 = vpop.f32.mrb[0].mxu0
        %577 = vmatprep.mubr.bf16.mxu0 0
        %578 = vmatmul.mubr.bf16.gmra.mrb[0].mxu0 %v481
        %v579 = vpop.f32.mrb[0].mxu0
        %v580 = vadd.f32 0.0, %v579
        %v581 = vpop.f32.mrb[0].mxu0
        %v582 = vpop.f32.mrb[0].mxu0
        %v583 = vadd.f32 0.0, %v582
        %v584 = vpop.f32.mrb[0].mxu0
        %585 = vmatprep.mubr.bf16.mxu0 0
        %586 = vmatmul.mubr.bf16.gmra.mrb[0].mxu0 %v484
        %v587 = vpop.f32.mrb[0].mxu0
        %v588 = vadd.f32 0.0, %v587
        %v589 = vpop.f32.mrb[0].mxu0
        %v590 = vpop.f32.mrb[0].mxu0
        %v591 = vadd.f32 0.0, %v590
        %v592 = vpop.f32.mrb[0].mxu0
        %593 = vmatprep.mubr.bf16.mxu0 0
        %594 = vmatmul.mubr.bf16.gmra.mrb[0].mxu0 %v487
        %v595 = vpop.f32.mrb[0].mxu0
        %v596 = vadd.f32 0.0, %v595
        %v597 = vpop.f32.mrb[0].mxu0
        %v598 = vpop.f32.mrb[0].mxu0
        %v599 = vadd.f32 0.0, %v598
        %v600 = vpop.f32.mrb[0].mxu0
        %601 = vmatprep.mubr.bf16.mxu0 0
        %602 = vmatmul.mubr.bf16.gmra.mrb[0].mxu0 %v490
        %v603 = vpop.f32.mrb[0].mxu0
        %v604 = vadd.f32 0.0, %v603
        %v605 = vpop.f32.mrb[0].mxu0
        %v606 = vpop.f32.mrb[0].mxu0
        %v607 = vadd.f32 0.0, %v606
        %v608 = vpop.f32.mrb[0].mxu0
        %609 = vmatprep.mubr.bf16.mxu0 0
        %610 = vmatmul.mubr.bf16.gmra.mrb[0].mxu0 %v493
        %v611 = vpop.f32.mrb[0].mxu0
        %v612 = vadd.f32 0.0, %v611
        %v613 = vpop.f32.mrb[0].mxu0
        %v614 = vpop.f32.mrb[0].mxu0
        %v615 = vadd.f32 0.0, %v614
        %v616 = vpop.f32.mrb[0].mxu0
        %617 = vmatprep.mubr.bf16.mxu0 0
        %618 = vmatmul.mubr.bf16.gmra.mrb[0].mxu0 %v496
        %v619 = vpop.f32.mrb[0].mxu0
        %v620 = vadd.f32 0.0, %v619
        %v621 = vpop.f32.mrb[0].mxu0
        %v622 = vpop.f32.mrb[0].mxu0
        %v623 = vadd.f32 0.0, %v622
        %v624 = vpop.f32.mrb[0].mxu0
        %625 = vmatprep.mubr.bf16.mxu0 0
        %626 = vmatmul.mubr.bf16.gmra.mrb[0].mxu0 %v499
        %v627 = vpop.f32.mrb[0].mxu0
        %v628 = vadd.f32 0.0, %v627
        %v629 = vpop.f32.mrb[0].mxu0
        %v630 = vpop.f32.mrb[0].mxu0
        %v631 = vadd.f32 0.0, %v630
        %v632 = vpop.f32.mrb[0].mxu0
        %633 = vmatprep.mubr.bf16.mxu0 0
        %634 = vmatmul.mubr.bf16.gmra.mrb[0].mxu0 %v502
        %v635 = vpop.f32.mrb[0].mxu0
        %v636 = vadd.f32 0.0, %v635
        %v637 = vpop.f32.mrb[0].mxu0
        %v638 = vpop.f32.mrb[0].mxu0
        %v639 = vadd.f32 0.0, %v638
        %v640 = vpop.f32.mrb[0].mxu0
        %641 = vmatprep.mubr.bf16.mxu0 0
        %642 = vmatmul.mubr.bf16.gmra.mrb[0].mxu0 %v505
        %v643 = vpop.f32.mrb[0].mxu0
        %v644 = vadd.f32 0.0, %v643
        %v645 = vpop.f32.mrb[0].mxu0
        %v646 = vpop.f32.mrb[0].mxu0
        %v647 = vadd.f32 0.0, %v646
        %v648 = vpop.f32.mrb[0].mxu0
        %649 = vmatprep.mubr.bf16.mxu0 0
        %650 = vmatmul.mubr.bf16.gmra.mrb[0].mxu0 %v508
        %v651 = vpop.f32.mrb[0].mxu0
        %v652 = vadd.f32 0.0, %v651
        %v653 = vpop.f32.mrb[0].mxu0
        %v654 = vpop.f32.mrb[0].mxu0
        %v655 = vadd.f32 0.0, %v654
        %v656 = vpop.f32.mrb[0].mxu0
        %657 = vmatprep.mubr.bf16.mxu0 0
        %658 = vmatmul.mubr.bf16.gmra.mrb[0].mxu0 %v511
        %v659 = vpop.f32.mrb[0].mxu0
        %v660 = vadd.f32 0.0, %v659
        %v661 = vpop.f32.mrb[0].mxu0
        %v662 = vpop.f32.mrb[0].mxu0
        %v663 = vadd.f32 0.0, %v662
        %v664 = vpop.f32.mrb[0].mxu0
        %665 = vmatprep.mubr.bf16.mxu0 0
        %666 = vmatmul.mubr.bf16.gmra.mrb[0].mxu0 %v514
        %v667 = vpop.f32.mrb[0].mxu0
        %v668 = vadd.f32 0.0, %v667
        %v669 = vpop.f32.mrb[0].mxu0
        %v670 = vpop.f32.mrb[0].mxu0
        %v671 = vadd.f32 0.0, %v670
        %v672 = vpop.f32.mrb[0].mxu0
        %673 = vmatprep.mubr.bf16.mxu0 0
        %674 = vmatmul.mubr.bf16.gmra.mrb[0].mxu0 %v517
        %v675 = vpop.f32.mrb[0].mxu0
        %v676 = vadd.f32 0.0, %v675
        %v677 = vpop.f32.mrb[0].mxu0
        %v678 = vpop.f32.mrb[0].mxu0
        %v679 = vadd.f32 0.0, %v678
        %v680 = vpop.f32.mrb[0].mxu0
        %681 = vmatprep.mubr.bf16.mxu0 0
        %682 = vmatmul.mubr.bf16.gmra.mrb[0].mxu0 %v520
        %v683 = vpop.f32.mrb[0].mxu0
        %v684 = vadd.f32 0.0, %v683
        %v685 = vpop.f32.mrb[0].mxu0
        %v686 = vpop.f32.mrb[0].mxu0
        %v687 = vadd.f32 0.0, %v686
        %v688 = vpop.f32.mrb[0].mxu0
        %689 = vdwg.mxu0
        %v691 = vsel %vm473, %v277, 0
        %v694 = vsel %vm473, %v278, 0
        %v697 = vsel %vm473, %v279, 0
        %v700 = vsel %vm473, %v280, 0
        %v703 = vsel %vm473, %v281, 0
        %v706 = vsel %vm473, %v282, 0
        %v709 = vsel %vm473, %v283, 0
        %v712 = vsel %vm473, %v284, 0
        %v715 = vsel %vm473, %v285, 0
        %v718 = vsel %vm473, %v286, 0
        %v721 = vsel %vm473, %v287, 0
        %v724 = vsel %vm473, %v288, 0
        %v727 = vsel %vm473, %v289, 0
        %v730 = vsel %vm473, %v290, 0
        %v733 = vsel %vm473, %v291, 0
        %v736 = vsel %vm473, %v292, 0
        %v739 = vand.u32 %v293, %v525
        %741 = vmatprep.subr.bf16.mxu0 0
        %742 = vmatpush1.bf16.msra.mxu0 %v739
        %743 = vmatprep.subr.bf16.mxu0 0
        %744 = vmatpush1.bf16.msra.mxu0 0
        %745 = vmatprep.subr.bf16.mxu0 0
        %746 = vmatpush1.bf16.msra.mxu0 0
        %747 = vmatprep.subr.bf16.mxu0 0
        %748 = vmatpush1.bf16.msra.mxu0 0
        %749 = vmatprep.subr.bf16.mxu0 0
        %750 = vmatpush1.bf16.msra.mxu0 0
        %751 = vmatprep.subr.bf16.mxu0 0
        %752 = vmatpush1.bf16.msra.mxu0 0
        %753 = vmatprep.subr.bf16.mxu0 0
        %754 = vmatpush1.bf16.msra.mxu0 0
        %755 = vmatprep.subr.bf16.mxu0 0
        %756 = vmatpush1.bf16.msra.mxu0 0
        %757 = vmatprep.subr.bf16.mxu0 0
        %758 = vmatpush1.bf16.msra.mxu0 0
        %759 = vmatprep.subr.bf16.mxu0 0
        %760 = vmatpush1.bf16.msra.mxu0 0
        %761 = vmatprep.subr.bf16.mxu0 0
        %762 = vmatpush1.bf16.msra.mxu0 0
        %763 = vmatprep.subr.bf16.mxu0 0
        %764 = vmatpush1.bf16.msra.mxu0 0
        %765 = vmatprep.subr.bf16.mxu0 0
        %766 = vmatpush1.bf16.msra.mxu0 0
        %767 = vmatprep.subr.bf16.mxu0 0
        %768 = vmatpush1.bf16.msra.mxu0 0
        %769 = vmatprep.subr.bf16.mxu0 0
        %770 = vmatpush1.bf16.msra.mxu0 0
        %771 = vmatprep.subr.bf16.mxu0 0
        %772 = vmatpush1.bf16.msra.mxu0 0
        %773 = vmatprep.mubr.bf16.mxu0 0
        %774 = vmatmul.mubr.bf16.gmra.mrb[0].mxu0 %v691
        %v775 = vpop.f32.mrb[0].mxu0
        %v776 = vadd.f32 %v564, %v775
        %v777 = vpop.f32.mrb[0].mxu0
        %v778 = vpop.f32.mrb[0].mxu0
        %v779 = vadd.f32 %v567, %v778
        %v780 = vpop.f32.mrb[0].mxu0
        %781 = vmatprep.mubr.bf16.mxu0 0
        %782 = vmatmul.mubr.bf16.gmra.mrb[0].mxu0 %v694
        %v783 = vpop.f32.mrb[0].mxu0
        %v784 = vadd.f32 %v572, %v783
        %v785 = vpop.f32.mrb[0].mxu0
        %v786 = vpop.f32.mrb[0].mxu0
        %v787 = vadd.f32 %v575, %v786
        %v788 = vpop.f32.mrb[0].mxu0
        %789 = vmatprep.mubr.bf16.mxu0 0
        %790 = vmatmul.mubr.bf16.gmra.mrb[0].mxu0 %v697
        %v791 = vpop.f32.mrb[0].mxu0
        %v792 = vadd.f32 %v580, %v791
        %v793 = vpop.f32.mrb[0].mxu0
        %v794 = vpop.f32.mrb[0].mxu0
        %v795 = vadd.f32 %v583, %v794
        %v796 = vpop.f32.mrb[0].mxu0
        %797 = vmatprep.mubr.bf16.mxu0 0
        %798 = vmatmul.mubr.bf16.gmra.mrb[0].mxu0 %v700
        %v799 = vpop.f32.mrb[0].mxu0
        %v800 = vadd.f32 %v588, %v799
        %v801 = vpop.f32.mrb[0].mxu0
        %v802 = vpop.f32.mrb[0].mxu0
        %v803 = vadd.f32 %v591, %v802
        %v804 = vpop.f32.mrb[0].mxu0
        %805 = vmatprep.mubr.bf16.mxu0 0
        %806 = vmatmul.mubr.bf16.gmra.mrb[0].mxu0 %v703
        %v807 = vpop.f32.mrb[0].mxu0
        %v808 = vadd.f32 %v596, %v807
        %v809 = vpop.f32.mrb[0].mxu0
        %v810 = vpop.f32.mrb[0].mxu0
        %v811 = vadd.f32 %v599, %v810
        %v812 = vpop.f32.mrb[0].mxu0
        %813 = vmatprep.mubr.bf16.mxu0 0
        %814 = vmatmul.mubr.bf16.gmra.mrb[0].mxu0 %v706
        %v815 = vpop.f32.mrb[0].mxu0
        %v816 = vadd.f32 %v604, %v815
        %v817 = vpop.f32.mrb[0].mxu0
        %v818 = vpop.f32.mrb[0].mxu0
        %v819 = vadd.f32 %v607, %v818
        %v820 = vpop.f32.mrb[0].mxu0
        %821 = vmatprep.mubr.bf16.mxu0 0
        %822 = vmatmul.mubr.bf16.gmra.mrb[0].mxu0 %v709
        %v823 = vpop.f32.mrb[0].mxu0
        %v824 = vadd.f32 %v612, %v823
        %v825 = vpop.f32.mrb[0].mxu0
        %v826 = vpop.f32.mrb[0].mxu0
        %v827 = vadd.f32 %v615, %v826
        %v828 = vpop.f32.mrb[0].mxu0
        %829 = vmatprep.mubr.bf16.mxu0 0
        %830 = vmatmul.mubr.bf16.gmra.mrb[0].mxu0 %v712
        %v831 = vpop.f32.mrb[0].mxu0
        %v832 = vadd.f32 %v620, %v831
        %v833 = vpop.f32.mrb[0].mxu0
        %v834 = vpop.f32.mrb[0].mxu0
        %v835 = vadd.f32 %v623, %v834
        %v836 = vpop.f32.mrb[0].mxu0
        %837 = vmatprep.mubr.bf16.mxu0 0
        %838 = vmatmul.mubr.bf16.gmra.mrb[0].mxu0 %v715
        %v839 = vpop.f32.mrb[0].mxu0
        %v840 = vadd.f32 %v628, %v839
        %v841 = vpop.f32.mrb[0].mxu0
        %v842 = vpop.f32.mrb[0].mxu0
        %v843 = vadd.f32 %v631, %v842
        %v844 = vpop.f32.mrb[0].mxu0
        %845 = vmatprep.mubr.bf16.mxu0 0
        %846 = vmatmul.mubr.bf16.gmra.mrb[0].mxu0 %v718
        %v847 = vpop.f32.mrb[0].mxu0
        %v848 = vadd.f32 %v636, %v847
        %v849 = vpop.f32.mrb[0].mxu0
        %v850 = vpop.f32.mrb[0].mxu0
        %v851 = vadd.f32 %v639, %v850
        %v852 = vpop.f32.mrb[0].mxu0
        %853 = vmatprep.mubr.bf16.mxu0 0
        %854 = vmatmul.mubr.bf16.gmra.mrb[0].mxu0 %v721
        %v855 = vpop.f32.mrb[0].mxu0
        %v856 = vadd.f32 %v644, %v855
        %v857 = vpop.f32.mrb[0].mxu0
        %v858 = vpop.f32.mrb[0].mxu0
        %v859 = vadd.f32 %v647, %v858
        %v860 = vpop.f32.mrb[0].mxu0
        %861 = vmatprep.mubr.bf16.mxu0 0
        %862 = vmatmul.mubr.bf16.gmra.mrb[0].mxu0 %v724
        %v863 = vpop.f32.mrb[0].mxu0
        %v864 = vadd.f32 %v652, %v863
        %v865 = vpop.f32.mrb[0].mxu0
        %v866 = vpop.f32.mrb[0].mxu0
        %v867 = vadd.f32 %v655, %v866
        %v868 = vpop.f32.mrb[0].mxu0
        %869 = vmatprep.mubr.bf16.mxu0 0
        %870 = vmatmul.mubr.bf16.gmra.mrb[0].mxu0 %v727
        %v871 = vpop.f32.mrb[0].mxu0
        %v872 = vadd.f32 %v660, %v871
        %v873 = vpop.f32.mrb[0].mxu0
        %v874 = vpop.f32.mrb[0].mxu0
        %v875 = vadd.f32 %v663, %v874
        %v876 = vpop.f32.mrb[0].mxu0
        %877 = vmatprep.mubr.bf16.mxu0 0
        %878 = vmatmul.mubr.bf16.gmra.mrb[0].mxu0 %v730
        %v879 = vpop.f32.mrb[0].mxu0
        %v880 = vadd.f32 %v668, %v879
        %v881 = vpop.f32.mrb[0].mxu0
        %v882 = vpop.f32.mrb[0].mxu0
        %v883 = vadd.f32 %v671, %v882
        %v884 = vpop.f32.mrb[0].mxu0
        %885 = vmatprep.mubr.bf16.mxu0 0
        %886 = vmatmul.mubr.bf16.gmra.mrb[0].mxu0 %v733
        %v887 = vpop.f32.mrb[0].mxu0
        %v888 = vadd.f32 %v676, %v887
        %v889 = vpop.f32.mrb[0].mxu0
        %v890 = vpop.f32.mrb[0].mxu0
        %v891 = vadd.f32 %v679, %v890
        %v892 = vpop.f32.mrb[0].mxu0
        %893 = vmatprep.mubr.bf16.mxu0 0
        %894 = vmatmul.mubr.bf16.gmra.mrb[0].mxu0 %v736
        %v895 = vpop.f32.mrb[0].mxu0
        %v896 = vadd.f32 %v684, %v895
        %v897 = vpop.f32.mrb[0].mxu0
        %v898 = vpop.f32.mrb[0].mxu0
        %v899 = vadd.f32 %v687, %v898
        %v900 = vpop.f32.mrb[0].mxu0
        %901 = vdwg.mxu0
        %vm902 = vcmask 1045504
        %v903 = vrot.slane %v223, 2
        %v904 = vrot.slane %v224, 2
        %v905 = vsel %vm902, %v903, %v904
        %v906 = vrot.slane %v225, 2
        %v907 = vsel %vm902, %v904, %v906
        %v908 = vrot.slane %v226, 2
        %v909 = vrot.slane %v227, 2
        %v910 = vsel %vm902, %v908, %v909
        %v911 = vrot.slane %v228, 2
        %v912 = vsel %vm902, %v909, %v911
        %v913 = vrot.slane %v229, 2
        %v914 = vrot.slane %v230, 2
        %v915 = vsel %vm902, %v913, %v914
        %v916 = vrot.slane %v231, 2
        %v917 = vsel %vm902, %v914, %v916
        %v918 = vrot.slane %v232, 2
        %v919 = vrot.slane %v233, 2
        %v920 = vsel %vm902, %v918, %v919
        %v921 = vrot.slane %v234, 2
        %v922 = vsel %vm902, %v919, %v921
        %v923 = vrot.slane %v235, 2
        %v924 = vrot.slane %v236, 2
        %v925 = vsel %vm902, %v923, %v924
        %v926 = vrot.slane %v237, 2
        %v927 = vsel %vm902, %v924, %v926
        %v928 = vrot.slane %v238, 2
        %v929 = vrot.slane %v239, 2
        %v930 = vsel %vm902, %v928, %v929
        %v931 = vrot.slane %v240, 2
        %v932 = vsel %vm902, %v929, %v931
        %v933 = vrot.slane %v241, 2
        %v934 = vrot.slane %v242, 2
        %v935 = vsel %vm902, %v933, %v934
        %v936 = vrot.slane %v243, 2
        %v937 = vsel %vm902, %v934, %v936
        %v938 = vrot.slane %v244, 2
        %v939 = vrot.slane %v245, 2
        %v940 = vsel %vm902, %v938, %v939
        %v941 = vrot.slane %v246, 2
        %v942 = vsel %vm902, %v939, %v941
        %v943 = vrot.slane %v247, 2
        %v944 = vrot.slane %v248, 2
        %v945 = vsel %vm902, %v943, %v944
        %v946 = vrot.slane %v249, 2
        %v947 = vsel %vm902, %v944, %v946
        %v948 = vrot.slane %v250, 2
        %v949 = vrot.slane %v251, 2
        %v950 = vsel %vm902, %v948, %v949
        %v951 = vrot.slane %v252, 2
        %v952 = vsel %vm902, %v949, %v951
        %v953 = vrot.slane %v253, 2
        %v954 = vrot.slane %v254, 2
        %v955 = vsel %vm902, %v953, %v954
        %v956 = vrot.slane %v255, 2
        %v957 = vsel %vm902, %v954, %v956
        %v958 = vrot.slane %v256, 2
        %v959 = vrot.slane %v257, 2
        %v960 = vsel %vm902, %v958, %v959
        %v961 = vrot.slane %v258, 2
        %v962 = vsel %vm902, %v959, %v961
        %v963 = vrot.slane %v259, 2
        %v964 = vrot.slane %v260, 2
        %v965 = vsel %vm902, %v963, %v964
        %v966 = vrot.slane %v261, 2
        %v967 = vsel %vm902, %v964, %v966
        %v968 = vrot.slane %v262, 2
        %v969 = vrot.slane %v263, 2
        %v970 = vsel %vm902, %v968, %v969
        %v971 = vrot.slane %v264, 2
        %v972 = vsel %vm902, %v969, %v971
        %v973 = vrot.slane %v265, 2
        %v974 = vrot.slane %v266, 2
        %v975 = vsel %vm902, %v973, %v974
        %v976 = vrot.slane %v267, 2
        %v977 = vsel %vm902, %v974, %v976
        %v978 = vrot.slane %v268, 2
        %v979 = vrot.slane %v269, 2
        %v980 = vsel %vm902, %v978, %v979
        %v981 = vrot.slane %v270, 2
        %v982 = vsel %vm902, %v979, %v981
        %v1015 = vpack.c.bf16 %v907, %v905
        %v1016 = vpack.c.bf16 %v912, %v910
        %v1017 = vpack.c.bf16 %v917, %v915
        %v1018 = vpack.c.bf16 %v922, %v920
        %v1019 = vpack.c.bf16 %v927, %v925
        %v1020 = vpack.c.bf16 %v932, %v930
        %v1021 = vpack.c.bf16 %v937, %v935
        %v1022 = vpack.c.bf16 %v942, %v940
        %v1023 = vpack.c.bf16 %v947, %v945
        %v1024 = vpack.c.bf16 %v952, %v950
        %v1025 = vpack.c.bf16 %v957, %v955
        %v1026 = vpack.c.bf16 %v962, %v960
        %v1027 = vpack.c.bf16 %v967, %v965
        %v1028 = vpack.c.bf16 %v972, %v970
        %v1029 = vpack.c.bf16 %v977, %v975
        %v1030 = vpack.c.bf16 %v982, %v980
        %s1031 = scalar_lea.vmem %s1, 4
        %v1032 = vld [vmem:[%s1031] sm:$0x3]
        %v1034 = vsel %vm473, %v1015, 0
        %v1037 = vsel %vm473, %v1016, 0
        %v1040 = vsel %vm473, %v1017, 0
        %v1043 = vsel %vm473, %v1018, 0
        %v1046 = vsel %vm473, %v1019, 0
        %v1049 = vsel %vm473, %v1020, 0
        %v1052 = vsel %vm473, %v1021, 0
        %v1055 = vsel %vm473, %v1022, 0
        %v1058 = vsel %vm473, %v1023, 0
        %v1061 = vsel %vm473, %v1024, 0
        %v1064 = vsel %vm473, %v1025, 0
        %v1067 = vsel %vm473, %v1026, 0
        %v1070 = vsel %vm473, %v1027, 0
        %v1073 = vsel %vm473, %v1028, 0
        %v1076 = vsel %vm473, %v1029, 0
        %v1079 = vsel %vm473, %v1030, 0
        %v1082 = vand.u32 %v1032, %v525
        %1084 = vmatprep.subr.bf16.mxu0 0
        %1085 = vmatpush1.bf16.msra.mxu0 %v1082
        %1086 = vmatprep.subr.bf16.mxu0 0
        %1087 = vmatpush1.bf16.msra.mxu0 0
        %1088 = vmatprep.subr.bf16.mxu0 0
        %1089 = vmatpush1.bf16.msra.mxu0 0
        %1090 = vmatprep.subr.bf16.mxu0 0
        %1091 = vmatpush1.bf16.msra.mxu0 0
        %1092 = vmatprep.subr.bf16.mxu0 0
        %1093 = vmatpush1.bf16.msra.mxu0 0
        %1094 = vmatprep.subr.bf16.mxu0 0
        %1095 = vmatpush1.bf16.msra.mxu0 0
        %1096 = vmatprep.subr.bf16.mxu0 0
        %1097 = vmatpush1.bf16.msra.mxu0 0
        %1098 = vmatprep.subr.bf16.mxu0 0
        %1099 = vmatpush1.bf16.msra.mxu0 0
        %1100 = vmatprep.subr.bf16.mxu0 0
        %1101 = vmatpush1.bf16.msra.mxu0 0
        %1102 = vmatprep.subr.bf16.mxu0 0
        %1103 = vmatpush1.bf16.msra.mxu0 0
        %1104 = vmatprep.subr.bf16.mxu0 0
        %1105 = vmatpush1.bf16.msra.mxu0 0
        %1106 = vmatprep.subr.bf16.mxu0 0
        %1107 = vmatpush1.bf16.msra.mxu0 0
        %1108 = vmatprep.subr.bf16.mxu0 0
        %1109 = vmatpush1.bf16.msra.mxu0 0
        %1110 = vmatprep.subr.bf16.mxu0 0
        %1111 = vmatpush1.bf16.msra.mxu0 0
        %1112 = vmatprep.subr.bf16.mxu0 0
        %1113 = vmatpush1.bf16.msra.mxu0 0
        %1114 = vmatprep.subr.bf16.mxu0 0
        %1115 = vmatpush1.bf16.msra.mxu0 0
        %1116 = vmatprep.mubr.bf16.mxu0 0
        %1117 = vmatmul.mubr.bf16.gmra.mrb[0].mxu0 %v1034
        %v1118 = vpop.f32.mrb[0].mxu0
        %v1119 = vadd.f32 0.0, %v1118
        %v1120 = vpop.f32.mrb[0].mxu0
        %v1121 = vpop.f32.mrb[0].mxu0
        %v1122 = vadd.f32 0.0, %v1121
        %v1123 = vpop.f32.mrb[0].mxu0
        %1124 = vmatprep.mubr.bf16.mxu0 0
        %1125 = vmatmul.mubr.bf16.gmra.mrb[0].mxu0 %v1037
        %v1126 = vpop.f32.mrb[0].mxu0
        %v1127 = vadd.f32 0.0, %v1126
        %v1128 = vpop.f32.mrb[0].mxu0
        %v1129 = vpop.f32.mrb[0].mxu0
        %v1130 = vadd.f32 0.0, %v1129
        %v1131 = vpop.f32.mrb[0].mxu0
        %1132 = vmatprep.mubr.bf16.mxu0 0
        %1133 = vmatmul.mubr.bf16.gmra.mrb[0].mxu0 %v1040
        %v1134 = vpop.f32.mrb[0].mxu0
        %v1135 = vadd.f32 0.0, %v1134
        %v1136 = vpop.f32.mrb[0].mxu0
        %v1137 = vpop.f32.mrb[0].mxu0
        %v1138 = vadd.f32 0.0, %v1137
        %v1139 = vpop.f32.mrb[0].mxu0
        %1140 = vmatprep.mubr.bf16.mxu0 0
        %1141 = vmatmul.mubr.bf16.gmra.mrb[0].mxu0 %v1043
        %v1142 = vpop.f32.mrb[0].mxu0
        %v1143 = vadd.f32 0.0, %v1142
        %v1144 = vpop.f32.mrb[0].mxu0
        %v1145 = vpop.f32.mrb[0].mxu0
        %v1146 = vadd.f32 0.0, %v1145
        %v1147 = vpop.f32.mrb[0].mxu0
        %1148 = vmatprep.mubr.bf16.mxu0 0
        %1149 = vmatmul.mubr.bf16.gmra.mrb[0].mxu0 %v1046
        %v1150 = vpop.f32.mrb[0].mxu0
        %v1151 = vadd.f32 0.0, %v1150
        %v1152 = vpop.f32.mrb[0].mxu0
        %v1153 = vpop.f32.mrb[0].mxu0
        %v1154 = vadd.f32 0.0, %v1153
        %v1155 = vpop.f32.mrb[0].mxu0
        %1156 = vmatprep.mubr.bf16.mxu0 0
        %1157 = vmatmul.mubr.bf16.gmra.mrb[0].mxu0 %v1049
        %v1158 = vpop.f32.mrb[0].mxu0
        %v1159 = vadd.f32 0.0, %v1158
        %v1160 = vpop.f32.mrb[0].mxu0
        %v1161 = vpop.f32.mrb[0].mxu0
        %v1162 = vadd.f32 0.0, %v1161
        %v1163 = vpop.f32.mrb[0].mxu0
        %1164 = vmatprep.mubr.bf16.mxu0 0
        %1165 = vmatmul.mubr.bf16.gmra.mrb[0].mxu0 %v1052
        %v1166 = vpop.f32.mrb[0].mxu0
        %v1167 = vadd.f32 0.0, %v1166
        %v1168 = vpop.f32.mrb[0].mxu0
        %v1169 = vpop.f32.mrb[0].mxu0
        %v1170 = vadd.f32 0.0, %v1169
        %v1171 = vpop.f32.mrb[0].mxu0
        %1172 = vmatprep.mubr.bf16.mxu0 0
        %1173 = vmatmul.mubr.bf16.gmra.mrb[0].mxu0 %v1055
        %v1174 = vpop.f32.mrb[0].mxu0
        %v1175 = vadd.f32 0.0, %v1174
        %v1176 = vpop.f32.mrb[0].mxu0
        %v1177 = vpop.f32.mrb[0].mxu0
        %v1178 = vadd.f32 0.0, %v1177
        %v1179 = vpop.f32.mrb[0].mxu0
        %1180 = vmatprep.mubr.bf16.mxu0 0
        %1181 = vmatmul.mubr.bf16.gmra.mrb[0].mxu0 %v1058
        %v1182 = vpop.f32.mrb[0].mxu0
        %v1183 = vadd.f32 0.0, %v1182
        %v1184 = vpop.f32.mrb[0].mxu0
        %v1185 = vpop.f32.mrb[0].mxu0
        %v1186 = vadd.f32 0.0, %v1185
        %v1187 = vpop.f32.mrb[0].mxu0
        %1188 = vmatprep.mubr.bf16.mxu0 0
        %1189 = vmatmul.mubr.bf16.gmra.mrb[0].mxu0 %v1061
        %v1190 = vpop.f32.mrb[0].mxu0
        %v1191 = vadd.f32 0.0, %v1190
        %v1192 = vpop.f32.mrb[0].mxu0
        %v1193 = vpop.f32.mrb[0].mxu0
        %v1194 = vadd.f32 0.0, %v1193
        %v1195 = vpop.f32.mrb[0].mxu0
        %1196 = vmatprep.mubr.bf16.mxu0 0
        %1197 = vmatmul.mubr.bf16.gmra.mrb[0].mxu0 %v1064
        %v1198 = vpop.f32.mrb[0].mxu0
        %v1199 = vadd.f32 0.0, %v1198
        %v1200 = vpop.f32.mrb[0].mxu0
        %v1201 = vpop.f32.mrb[0].mxu0
        %v1202 = vadd.f32 0.0, %v1201
        %v1203 = vpop.f32.mrb[0].mxu0
        %1204 = vmatprep.mubr.bf16.mxu0 0
        %1205 = vmatmul.mubr.bf16.gmra.mrb[0].mxu0 %v1067
        %v1206 = vpop.f32.mrb[0].mxu0
        %v1207 = vadd.f32 0.0, %v1206
        %v1208 = vpop.f32.mrb[0].mxu0
        %v1209 = vpop.f32.mrb[0].mxu0
        %v1210 = vadd.f32 0.0, %v1209
        %v1211 = vpop.f32.mrb[0].mxu0
        %1212 = vmatprep.mubr.bf16.mxu0 0
        %1213 = vmatmul.mubr.bf16.gmra.mrb[0].mxu0 %v1070
        %v1214 = vpop.f32.mrb[0].mxu0
        %v1215 = vadd.f32 0.0, %v1214
        %v1216 = vpop.f32.mrb[0].mxu0
        %v1217 = vpop.f32.mrb[0].mxu0
        %v1218 = vadd.f32 0.0, %v1217
        %v1219 = vpop.f32.mrb[0].mxu0
        %1220 = vmatprep.mubr.bf16.mxu0 0
        %1221 = vmatmul.mubr.bf16.gmra.mrb[0].mxu0 %v1073
        %v1222 = vpop.f32.mrb[0].mxu0
        %v1223 = vadd.f32 0.0, %v1222
        %v1224 = vpop.f32.mrb[0].mxu0
        %v1225 = vpop.f32.mrb[0].mxu0
        %v1226 = vadd.f32 0.0, %v1225
        %v1227 = vpop.f32.mrb[0].mxu0
        %1228 = vmatprep.mubr.bf16.mxu0 0
        %1229 = vmatmul.mubr.bf16.gmra.mrb[0].mxu0 %v1076
        %v1230 = vpop.f32.mrb[0].mxu0
        %v1231 = vadd.f32 0.0, %v1230
        %v1232 = vpop.f32.mrb[0].mxu0
        %v1233 = vpop.f32.mrb[0].mxu0
        %v1234 = vadd.f32 0.0, %v1233
        %v1235 = vpop.f32.mrb[0].mxu0
        %1236 = vmatprep.mubr.bf16.mxu0 0
        %1237 = vmatmul.mubr.bf16.gmra.mrb[0].mxu0 %v1079
        %v1238 = vpop.f32.mrb[0].mxu0
        %v1239 = vadd.f32 0.0, %v1238
        %v1240 = vpop.f32.mrb[0].mxu0
        %v1241 = vpop.f32.mrb[0].mxu0
        %v1242 = vadd.f32 0.0, %v1241
        %v1243 = vpop.f32.mrb[0].mxu0
        %1244 = vdwg.mxu0
        %v1245 = vadd.f32 %v776, %v1119
        %v1246 = vadd.f32 %v779, %v1122
        %v1247 = vadd.f32 %v784, %v1127
        %v1248 = vadd.f32 %v787, %v1130
        %v1249 = vadd.f32 %v792, %v1135
        %v1250 = vadd.f32 %v795, %v1138
        %v1251 = vadd.f32 %v800, %v1143
        %v1252 = vadd.f32 %v803, %v1146
        %v1253 = vadd.f32 %v808, %v1151
        %v1254 = vadd.f32 %v811, %v1154
        %v1255 = vadd.f32 %v816, %v1159
        %v1256 = vadd.f32 %v819, %v1162
        %v1257 = vadd.f32 %v824, %v1167
        %v1258 = vadd.f32 %v827, %v1170
        %v1259 = vadd.f32 %v832, %v1175
        %v1260 = vadd.f32 %v835, %v1178
        %v1261 = vadd.f32 %v840, %v1183
        %v1262 = vadd.f32 %v843, %v1186
        %v1263 = vadd.f32 %v848, %v1191
        %v1264 = vadd.f32 %v851, %v1194
        %v1265 = vadd.f32 %v856, %v1199
        %v1266 = vadd.f32 %v859, %v1202
        %v1267 = vadd.f32 %v864, %v1207
        %v1268 = vadd.f32 %v867, %v1210
        %v1269 = vadd.f32 %v872, %v1215
        %v1270 = vadd.f32 %v875, %v1218
        %v1271 = vadd.f32 %v880, %v1223
        %v1272 = vadd.f32 %v883, %v1226
        %v1273 = vadd.f32 %v888, %v1231
        %v1274 = vadd.f32 %v891, %v1234
        %v1275 = vadd.f32 %v896, %v1239
        %v1276 = vadd.f32 %v899, %v1242
        %v1277 = vpack.c.bf16 %v272, %v271
        %s1278 = scalar_lea.vmem %s1, 6
        %v1279 = vld [vmem:[%s1278] sm:$0x3]
        %v1281 = vsel %vm473, %v1277, 0
        %v1284 = vand.u32 %v1279, %v525
        %1286 = vmatprep.subr.bf16.mxu0 0
        %1287 = vmatpush1.bf16.msra.mxu0 %v1284
        %1288 = vmatprep.subr.bf16.mxu0 0
        %1289 = vmatpush1.bf16.msra.mxu0 0
        %1290 = vmatprep.subr.bf16.mxu0 0
        %1291 = vmatpush1.bf16.msra.mxu0 0
        %1292 = vmatprep.subr.bf16.mxu0 0
        %1293 = vmatpush1.bf16.msra.mxu0 0
        %1294 = vmatprep.subr.bf16.mxu0 0
        %1295 = vmatpush1.bf16.msra.mxu0 0
        %1296 = vmatprep.subr.bf16.mxu0 0
        %1297 = vmatpush1.bf16.msra.mxu0 0
        %1298 = vmatprep.subr.bf16.mxu0 0
        %1299 = vmatpush1.bf16.msra.mxu0 0
        %1300 = vmatprep.subr.bf16.mxu0 0
        %1301 = vmatpush1.bf16.msra.mxu0 0
        %1302 = vmatprep.subr.bf16.mxu0 0
        %1303 = vmatpush1.bf16.msra.mxu0 0
        %1304 = vmatprep.subr.bf16.mxu0 0
        %1305 = vmatpush1.bf16.msra.mxu0 0
        %1306 = vmatprep.subr.bf16.mxu0 0
        %1307 = vmatpush1.bf16.msra.mxu0 0
        %1308 = vmatprep.subr.bf16.mxu0 0
        %1309 = vmatpush1.bf16.msra.mxu0 0
        %1310 = vmatprep.subr.bf16.mxu0 0
        %1311 = vmatpush1.bf16.msra.mxu0 0
        %1312 = vmatprep.subr.bf16.mxu0 0
        %1313 = vmatpush1.bf16.msra.mxu0 0
        %1314 = vmatprep.subr.bf16.mxu0 0
        %1315 = vmatpush1.bf16.msra.mxu0 0
        %1316 = vmatprep.subr.bf16.mxu0 0
        %1317 = vmatpush1.bf16.msra.mxu0 0
        %1318 = vmatprep.mubr.bf16.mxu0 0
        %1319 = vmatmul.mubr.bf16.gmra.mrb[0].mxu0 %v694
        %v1320 = vpop.f32.mrb[0].mxu0
        %v1321 = vadd.f32 0.0, %v1320
        %v1322 = vpop.f32.mrb[0].mxu0
        %v1323 = vpop.f32.mrb[0].mxu0
        %v1324 = vadd.f32 0.0, %v1323
        %v1325 = vpop.f32.mrb[0].mxu0
        %1326 = vmatprep.mubr.bf16.mxu0 0
        %1327 = vmatmul.mubr.bf16.gmra.mrb[0].mxu0 %v697
        %v1328 = vpop.f32.mrb[0].mxu0
        %v1329 = vadd.f32 0.0, %v1328
        %v1330 = vpop.f32.mrb[0].mxu0
        %v1331 = vpop.f32.mrb[0].mxu0
        %v1332 = vadd.f32 0.0, %v1331
        %v1333 = vpop.f32.mrb[0].mxu0
        %1334 = vmatprep.mubr.bf16.mxu0 0
        %1335 = vmatmul.mubr.bf16.gmra.mrb[0].mxu0 %v700
        %v1336 = vpop.f32.mrb[0].mxu0
        %v1337 = vadd.f32 0.0, %v1336
        %v1338 = vpop.f32.mrb[0].mxu0
        %v1339 = vpop.f32.mrb[0].mxu0
        %v1340 = vadd.f32 0.0, %v1339
        %v1341 = vpop.f32.mrb[0].mxu0
        %1342 = vmatprep.mubr.bf16.mxu0 0
        %1343 = vmatmul.mubr.bf16.gmra.mrb[0].mxu0 %v703
        %v1344 = vpop.f32.mrb[0].mxu0
        %v1345 = vadd.f32 0.0, %v1344
        %v1346 = vpop.f32.mrb[0].mxu0
        %v1347 = vpop.f32.mrb[0].mxu0
        %v1348 = vadd.f32 0.0, %v1347
        %v1349 = vpop.f32.mrb[0].mxu0
        %1350 = vmatprep.mubr.bf16.mxu0 0
        %1351 = vmatmul.mubr.bf16.gmra.mrb[0].mxu0 %v706
        %v1352 = vpop.f32.mrb[0].mxu0
        %v1353 = vadd.f32 0.0, %v1352
        %v1354 = vpop.f32.mrb[0].mxu0
        %v1355 = vpop.f32.mrb[0].mxu0
        %v1356 = vadd.f32 0.0, %v1355
        %v1357 = vpop.f32.mrb[0].mxu0
        %1358 = vmatprep.mubr.bf16.mxu0 0
        %1359 = vmatmul.mubr.bf16.gmra.mrb[0].mxu0 %v709
        %v1360 = vpop.f32.mrb[0].mxu0
        %v1361 = vadd.f32 0.0, %v1360
        %v1362 = vpop.f32.mrb[0].mxu0
        %v1363 = vpop.f32.mrb[0].mxu0
        %v1364 = vadd.f32 0.0, %v1363
        %v1365 = vpop.f32.mrb[0].mxu0
        %1366 = vmatprep.mubr.bf16.mxu0 0
        %1367 = vmatmul.mubr.bf16.gmra.mrb[0].mxu0 %v712
        %v1368 = vpop.f32.mrb[0].mxu0
        %v1369 = vadd.f32 0.0, %v1368
        %v1370 = vpop.f32.mrb[0].mxu0
        %v1371 = vpop.f32.mrb[0].mxu0
        %v1372 = vadd.f32 0.0, %v1371
        %v1373 = vpop.f32.mrb[0].mxu0
        %1374 = vmatprep.mubr.bf16.mxu0 0
        %1375 = vmatmul.mubr.bf16.gmra.mrb[0].mxu0 %v715
        %v1376 = vpop.f32.mrb[0].mxu0
        %v1377 = vadd.f32 0.0, %v1376
        %v1378 = vpop.f32.mrb[0].mxu0
        %v1379 = vpop.f32.mrb[0].mxu0
        %v1380 = vadd.f32 0.0, %v1379
        %v1381 = vpop.f32.mrb[0].mxu0
        %1382 = vmatprep.mubr.bf16.mxu0 0
        %1383 = vmatmul.mubr.bf16.gmra.mrb[0].mxu0 %v718
        %v1384 = vpop.f32.mrb[0].mxu0
        %v1385 = vadd.f32 0.0, %v1384
        %v1386 = vpop.f32.mrb[0].mxu0
        %v1387 = vpop.f32.mrb[0].mxu0
        %v1388 = vadd.f32 0.0, %v1387
        %v1389 = vpop.f32.mrb[0].mxu0
        %1390 = vmatprep.mubr.bf16.mxu0 0
        %1391 = vmatmul.mubr.bf16.gmra.mrb[0].mxu0 %v721
        %v1392 = vpop.f32.mrb[0].mxu0
        %v1393 = vadd.f32 0.0, %v1392
        %v1394 = vpop.f32.mrb[0].mxu0
        %v1395 = vpop.f32.mrb[0].mxu0
        %v1396 = vadd.f32 0.0, %v1395
        %v1397 = vpop.f32.mrb[0].mxu0
        %1398 = vmatprep.mubr.bf16.mxu0 0
        %1399 = vmatmul.mubr.bf16.gmra.mrb[0].mxu0 %v724
        %v1400 = vpop.f32.mrb[0].mxu0
        %v1401 = vadd.f32 0.0, %v1400
        %v1402 = vpop.f32.mrb[0].mxu0
        %v1403 = vpop.f32.mrb[0].mxu0
        %v1404 = vadd.f32 0.0, %v1403
        %v1405 = vpop.f32.mrb[0].mxu0
        %1406 = vmatprep.mubr.bf16.mxu0 0
        %1407 = vmatmul.mubr.bf16.gmra.mrb[0].mxu0 %v727
        %v1408 = vpop.f32.mrb[0].mxu0
        %v1409 = vadd.f32 0.0, %v1408
        %v1410 = vpop.f32.mrb[0].mxu0
        %v1411 = vpop.f32.mrb[0].mxu0
        %v1412 = vadd.f32 0.0, %v1411
        %v1413 = vpop.f32.mrb[0].mxu0
        %1414 = vmatprep.mubr.bf16.mxu0 0
        %1415 = vmatmul.mubr.bf16.gmra.mrb[0].mxu0 %v730
        %v1416 = vpop.f32.mrb[0].mxu0
        %v1417 = vadd.f32 0.0, %v1416
        %v1418 = vpop.f32.mrb[0].mxu0
        %v1419 = vpop.f32.mrb[0].mxu0
        %v1420 = vadd.f32 0.0, %v1419
        %v1421 = vpop.f32.mrb[0].mxu0
        %1422 = vmatprep.mubr.bf16.mxu0 0
        %1423 = vmatmul.mubr.bf16.gmra.mrb[0].mxu0 %v733
        %v1424 = vpop.f32.mrb[0].mxu0
        %v1425 = vadd.f32 0.0, %v1424
        %v1426 = vpop.f32.mrb[0].mxu0
        %v1427 = vpop.f32.mrb[0].mxu0
        %v1428 = vadd.f32 0.0, %v1427
        %v1429 = vpop.f32.mrb[0].mxu0
        %1430 = vmatprep.mubr.bf16.mxu0 0
        %1431 = vmatmul.mubr.bf16.gmra.mrb[0].mxu0 %v736
        %v1432 = vpop.f32.mrb[0].mxu0
        %v1433 = vadd.f32 0.0, %v1432
        %v1434 = vpop.f32.mrb[0].mxu0
        %v1435 = vpop.f32.mrb[0].mxu0
        %v1436 = vadd.f32 0.0, %v1435
        %v1437 = vpop.f32.mrb[0].mxu0
        %1438 = vmatprep.mubr.bf16.mxu0 0
        %1439 = vmatmul.mubr.bf16.gmra.mrb[0].mxu0 %v1281
        %v1440 = vpop.f32.mrb[0].mxu0
        %v1441 = vadd.f32 0.0, %v1440
        %v1442 = vpop.f32.mrb[0].mxu0
        %v1443 = vpop.f32.mrb[0].mxu0
        %v1444 = vadd.f32 0.0, %v1443
        %v1445 = vpop.f32.mrb[0].mxu0
        %1446 = vdwg.mxu0
        %v1447 = vadd.f32 %v1245, %v1321
        %v1448 = vadd.f32 %v1246, %v1324
        %v1449 = vadd.f32 %v1247, %v1329
        %v1450 = vadd.f32 %v1248, %v1332
        %v1451 = vadd.f32 %v1249, %v1337
        %v1452 = vadd.f32 %v1250, %v1340
        %v1453 = vadd.f32 %v1251, %v1345
        %v1454 = vadd.f32 %v1252, %v1348
        %v1455 = vadd.f32 %v1253, %v1353
        %v1456 = vadd.f32 %v1254, %v1356
        %v1457 = vadd.f32 %v1255, %v1361
        %v1458 = vadd.f32 %v1256, %v1364
        %v1459 = vadd.f32 %v1257, %v1369
        %v1460 = vadd.f32 %v1258, %v1372
        %v1461 = vadd.f32 %v1259, %v1377
        %v1462 = vadd.f32 %v1260, %v1380
        %v1463 = vadd.f32 %v1261, %v1385
        %v1464 = vadd.f32 %v1262, %v1388
        %v1465 = vadd.f32 %v1263, %v1393
        %v1466 = vadd.f32 %v1264, %v1396
        %v1467 = vadd.f32 %v1265, %v1401
        %v1468 = vadd.f32 %v1266, %v1404
        %v1469 = vadd.f32 %v1267, %v1409
        %v1470 = vadd.f32 %v1268, %v1412
        %v1471 = vadd.f32 %v1269, %v1417
        %v1472 = vadd.f32 %v1270, %v1420
        %v1473 = vadd.f32 %v1271, %v1425
        %v1474 = vadd.f32 %v1272, %v1428
        %v1475 = vadd.f32 %v1273, %v1433
        %v1476 = vadd.f32 %v1274, %v1436
        %v1477 = vadd.f32 %v1275, %v1441
        %v1478 = vadd.f32 %v1276, %v1444
        %v1482 = vrot.slane %v271, 1
        %v1483 = vrot.slane %v272, 1
        %v1484 = vsel %vm342, %v1482, %v1483
        %v1485 = vrot.slane %v273, 1
        %v1486 = vsel %vm342, %v1483, %v1485
        %v1489 = vpack.c.bf16 %v1486, %v1484
        %s1490 = scalar_lea.vmem %s1, 8
        %v1491 = vld [vmem:[%s1490] sm:$0x3]
        %v1493 = vsel %vm473, %v1489, 0
        %v1496 = vand.u32 %v1491, %v525
        %1498 = vmatprep.subr.bf16.mxu0 0
        %1499 = vmatpush1.bf16.msra.mxu0 %v1496
        %1500 = vmatprep.subr.bf16.mxu0 0
        %1501 = vmatpush1.bf16.msra.mxu0 0
        %1502 = vmatprep.subr.bf16.mxu0 0
        %1503 = vmatpush1.bf16.msra.mxu0 0
        %1504 = vmatprep.subr.bf16.mxu0 0
        %1505 = vmatpush1.bf16.msra.mxu0 0
        %1506 = vmatprep.subr.bf16.mxu0 0
        %1507 = vmatpush1.bf16.msra.mxu0 0
        %1508 = vmatprep.subr.bf16.mxu0 0
        %1509 = vmatpush1.bf16.msra.mxu0 0
        %1510 = vmatprep.subr.bf16.mxu0 0
        %1511 = vmatpush1.bf16.msra.mxu0 0
        %1512 = vmatprep.subr.bf16.mxu0 0
        %1513 = vmatpush1.bf16.msra.mxu0 0
        %1514 = vmatprep.subr.bf16.mxu0 0
        %1515 = vmatpush1.bf16.msra.mxu0 0
        %1516 = vmatprep.subr.bf16.mxu0 0
        %1517 = vmatpush1.bf16.msra.mxu0 0
        %1518 = vmatprep.subr.bf16.mxu0 0
        %1519 = vmatpush1.bf16.msra.mxu0 0
        %1520 = vmatprep.subr.bf16.mxu0 0
        %1521 = vmatpush1.bf16.msra.mxu0 0
        %1522 = vmatprep.subr.bf16.mxu0 0
        %1523 = vmatpush1.bf16.msra.mxu0 0
        %1524 = vmatprep.subr.bf16.mxu0 0
        %1525 = vmatpush1.bf16.msra.mxu0 0
        %1526 = vmatprep.subr.bf16.mxu0 0
        %1527 = vmatpush1.bf16.msra.mxu0 0
        %1528 = vmatprep.subr.bf16.mxu0 0
        %1529 = vmatpush1.bf16.msra.mxu0 0
        %1530 = vmatprep.mubr.bf16.mxu0 0
        %1531 = vmatmul.mubr.bf16.gmra.mrb[0].mxu0 %v478
        %v1532 = vpop.f32.mrb[0].mxu0
        %v1533 = vadd.f32 0.0, %v1532
        %v1534 = vpop.f32.mrb[0].mxu0
        %v1535 = vpop.f32.mrb[0].mxu0
        %v1536 = vadd.f32 0.0, %v1535
        %v1537 = vpop.f32.mrb[0].mxu0
        %1538 = vmatprep.mubr.bf16.mxu0 0
        %1539 = vmatmul.mubr.bf16.gmra.mrb[0].mxu0 %v481
        %v1540 = vpop.f32.mrb[0].mxu0
        %v1541 = vadd.f32 0.0, %v1540
        %v1542 = vpop.f32.mrb[0].mxu0
        %v1543 = vpop.f32.mrb[0].mxu0
        %v1544 = vadd.f32 0.0, %v1543
        %v1545 = vpop.f32.mrb[0].mxu0
        %1546 = vmatprep.mubr.bf16.mxu0 0
        %1547 = vmatmul.mubr.bf16.gmra.mrb[0].mxu0 %v484
        %v1548 = vpop.f32.mrb[0].mxu0
        %v1549 = vadd.f32 0.0, %v1548
        %v1550 = vpop.f32.mrb[0].mxu0
        %v1551 = vpop.f32.mrb[0].mxu0
        %v1552 = vadd.f32 0.0, %v1551
        %v1553 = vpop.f32.mrb[0].mxu0
        %1554 = vmatprep.mubr.bf16.mxu0 0
        %1555 = vmatmul.mubr.bf16.gmra.mrb[0].mxu0 %v487
        %v1556 = vpop.f32.mrb[0].mxu0
        %v1557 = vadd.f32 0.0, %v1556
        %v1558 = vpop.f32.mrb[0].mxu0
        %v1559 = vpop.f32.mrb[0].mxu0
        %v1560 = vadd.f32 0.0, %v1559
        %v1561 = vpop.f32.mrb[0].mxu0
        %1562 = vmatprep.mubr.bf16.mxu0 0
        %1563 = vmatmul.mubr.bf16.gmra.mrb[0].mxu0 %v490
        %v1564 = vpop.f32.mrb[0].mxu0
        %v1565 = vadd.f32 0.0, %v1564
        %v1566 = vpop.f32.mrb[0].mxu0
        %v1567 = vpop.f32.mrb[0].mxu0
        %v1568 = vadd.f32 0.0, %v1567
        %v1569 = vpop.f32.mrb[0].mxu0
        %1570 = vmatprep.mubr.bf16.mxu0 0
        %1571 = vmatmul.mubr.bf16.gmra.mrb[0].mxu0 %v493
        %v1572 = vpop.f32.mrb[0].mxu0
        %v1573 = vadd.f32 0.0, %v1572
        %v1574 = vpop.f32.mrb[0].mxu0
        %v1575 = vpop.f32.mrb[0].mxu0
        %v1576 = vadd.f32 0.0, %v1575
        %v1577 = vpop.f32.mrb[0].mxu0
        %1578 = vmatprep.mubr.bf16.mxu0 0
        %1579 = vmatmul.mubr.bf16.gmra.mrb[0].mxu0 %v496
        %v1580 = vpop.f32.mrb[0].mxu0
        %v1581 = vadd.f32 0.0, %v1580
        %v1582 = vpop.f32.mrb[0].mxu0
        %v1583 = vpop.f32.mrb[0].mxu0
        %v1584 = vadd.f32 0.0, %v1583
        %v1585 = vpop.f32.mrb[0].mxu0
        %1586 = vmatprep.mubr.bf16.mxu0 0
        %1587 = vmatmul.mubr.bf16.gmra.mrb[0].mxu0 %v499
        %v1588 = vpop.f32.mrb[0].mxu0
        %v1589 = vadd.f32 0.0, %v1588
        %v1590 = vpop.f32.mrb[0].mxu0
        %v1591 = vpop.f32.mrb[0].mxu0
        %v1592 = vadd.f32 0.0, %v1591
        %v1593 = vpop.f32.mrb[0].mxu0
        %1594 = vmatprep.mubr.bf16.mxu0 0
        %1595 = vmatmul.mubr.bf16.gmra.mrb[0].mxu0 %v502
        %v1596 = vpop.f32.mrb[0].mxu0
        %v1597 = vadd.f32 0.0, %v1596
        %v1598 = vpop.f32.mrb[0].mxu0
        %v1599 = vpop.f32.mrb[0].mxu0
        %v1600 = vadd.f32 0.0, %v1599
        %v1601 = vpop.f32.mrb[0].mxu0
        %1602 = vmatprep.mubr.bf16.mxu0 0
        %1603 = vmatmul.mubr.bf16.gmra.mrb[0].mxu0 %v505
        %v1604 = vpop.f32.mrb[0].mxu0
        %v1605 = vadd.f32 0.0, %v1604
        %v1606 = vpop.f32.mrb[0].mxu0
        %v1607 = vpop.f32.mrb[0].mxu0
        %v1608 = vadd.f32 0.0, %v1607
        %v1609 = vpop.f32.mrb[0].mxu0
        %1610 = vmatprep.mubr.bf16.mxu0 0
        %1611 = vmatmul.mubr.bf16.gmra.mrb[0].mxu0 %v508
        %v1612 = vpop.f32.mrb[0].mxu0
        %v1613 = vadd.f32 0.0, %v1612
        %v1614 = vpop.f32.mrb[0].mxu0
        %v1615 = vpop.f32.mrb[0].mxu0
        %v1616 = vadd.f32 0.0, %v1615
        %v1617 = vpop.f32.mrb[0].mxu0
        %1618 = vmatprep.mubr.bf16.mxu0 0
        %1619 = vmatmul.mubr.bf16.gmra.mrb[0].mxu0 %v511
        %v1620 = vpop.f32.mrb[0].mxu0
        %v1621 = vadd.f32 0.0, %v1620
        %v1622 = vpop.f32.mrb[0].mxu0
        %v1623 = vpop.f32.mrb[0].mxu0
        %v1624 = vadd.f32 0.0, %v1623
        %v1625 = vpop.f32.mrb[0].mxu0
        %1626 = vmatprep.mubr.bf16.mxu0 0
        %1627 = vmatmul.mubr.bf16.gmra.mrb[0].mxu0 %v514
        %v1628 = vpop.f32.mrb[0].mxu0
        %v1629 = vadd.f32 0.0, %v1628
        %v1630 = vpop.f32.mrb[0].mxu0
        %v1631 = vpop.f32.mrb[0].mxu0
        %v1632 = vadd.f32 0.0, %v1631
        %v1633 = vpop.f32.mrb[0].mxu0
        %1634 = vmatprep.mubr.bf16.mxu0 0
        %1635 = vmatmul.mubr.bf16.gmra.mrb[0].mxu0 %v517
        %v1636 = vpop.f32.mrb[0].mxu0
        %v1637 = vadd.f32 0.0, %v1636
        %v1638 = vpop.f32.mrb[0].mxu0
        %v1639 = vpop.f32.mrb[0].mxu0
        %v1640 = vadd.f32 0.0, %v1639
        %v1641 = vpop.f32.mrb[0].mxu0
        %1642 = vmatprep.mubr.bf16.mxu0 0
        %1643 = vmatmul.mubr.bf16.gmra.mrb[0].mxu0 %v520
        %v1644 = vpop.f32.mrb[0].mxu0
        %v1645 = vadd.f32 0.0, %v1644
        %v1646 = vpop.f32.mrb[0].mxu0
        %v1647 = vpop.f32.mrb[0].mxu0
        %v1648 = vadd.f32 0.0, %v1647
        %v1649 = vpop.f32.mrb[0].mxu0
        %1650 = vmatprep.mubr.bf16.mxu0 0
        %1651 = vmatmul.mubr.bf16.gmra.mrb[0].mxu0 %v1493
        %v1652 = vpop.f32.mrb[0].mxu0
        %v1653 = vadd.f32 0.0, %v1652
        %v1654 = vpop.f32.mrb[0].mxu0
        %v1655 = vpop.f32.mrb[0].mxu0
        %v1656 = vadd.f32 0.0, %v1655
        %v1657 = vpop.f32.mrb[0].mxu0
        %1658 = vdwg.mxu0
        %v1659 = vadd.f32 %v1447, %v1533
        %v1660 = vadd.f32 %v1448, %v1536
        %v1661 = vadd.f32 %v1449, %v1541
        %v1662 = vadd.f32 %v1450, %v1544
        %v1663 = vadd.f32 %v1451, %v1549
        %v1664 = vadd.f32 %v1452, %v1552
        %v1665 = vadd.f32 %v1453, %v1557
        %v1666 = vadd.f32 %v1454, %v1560
        %v1667 = vadd.f32 %v1455, %v1565
        %v1668 = vadd.f32 %v1456, %v1568
        %v1669 = vadd.f32 %v1457, %v1573
        %v1670 = vadd.f32 %v1458, %v1576
        %v1671 = vadd.f32 %v1459, %v1581
        %v1672 = vadd.f32 %v1460, %v1584
        %v1673 = vadd.f32 %v1461, %v1589
        %v1674 = vadd.f32 %v1462, %v1592
        %v1675 = vadd.f32 %v1463, %v1597
        %v1676 = vadd.f32 %v1464, %v1600
        %v1677 = vadd.f32 %v1465, %v1605
        %v1678 = vadd.f32 %v1466, %v1608
        %v1679 = vadd.f32 %v1467, %v1613
        %v1680 = vadd.f32 %v1468, %v1616
        %v1681 = vadd.f32 %v1469, %v1621
        %v1682 = vadd.f32 %v1470, %v1624
        %v1683 = vadd.f32 %v1471, %v1629
        %v1684 = vadd.f32 %v1472, %v1632
        %v1685 = vadd.f32 %v1473, %v1637
        %v1686 = vadd.f32 %v1474, %v1640
        %v1687 = vadd.f32 %v1475, %v1645
        %v1688 = vadd.f32 %v1476, %v1648
        %v1689 = vadd.f32 %v1477, %v1653
        %v1690 = vadd.f32 %v1478, %v1656
        %v1691 = vrot.slane %v271, 2
        %v1692 = vrot.slane %v272, 2
        %v1693 = vsel %vm902, %v1691, %v1692
        %v1694 = vrot.slane %v273, 2
        %v1695 = vsel %vm902, %v1692, %v1694
        %v1698 = vpack.c.bf16 %v1695, %v1693
        %s1699 = scalar_lea.vmem %s1, 10
        %v1700 = vld [vmem:[%s1699] sm:$0x3]
        %v1702 = vsel %vm473, %v1698, 0
        %v1705 = vand.u32 %v1700, %v525
        %1707 = vmatprep.subr.bf16.mxu0 0
        %1708 = vmatpush1.bf16.msra.mxu0 %v1705
        %1709 = vmatprep.subr.bf16.mxu0 0
        %1710 = vmatpush1.bf16.msra.mxu0 0
        %1711 = vmatprep.subr.bf16.mxu0 0
        %1712 = vmatpush1.bf16.msra.mxu0 0
        %1713 = vmatprep.subr.bf16.mxu0 0
        %1714 = vmatpush1.bf16.msra.mxu0 0
        %1715 = vmatprep.subr.bf16.mxu0 0
        %1716 = vmatpush1.bf16.msra.mxu0 0
        %1717 = vmatprep.subr.bf16.mxu0 0
        %1718 = vmatpush1.bf16.msra.mxu0 0
        %1719 = vmatprep.subr.bf16.mxu0 0
        %1720 = vmatpush1.bf16.msra.mxu0 0
        %1721 = vmatprep.subr.bf16.mxu0 0
        %1722 = vmatpush1.bf16.msra.mxu0 0
        %1723 = vmatprep.subr.bf16.mxu0 0
        %1724 = vmatpush1.bf16.msra.mxu0 0
        %1725 = vmatprep.subr.bf16.mxu0 0
        %1726 = vmatpush1.bf16.msra.mxu0 0
        %1727 = vmatprep.subr.bf16.mxu0 0
        %1728 = vmatpush1.bf16.msra.mxu0 0
        %1729 = vmatprep.subr.bf16.mxu0 0
        %1730 = vmatpush1.bf16.msra.mxu0 0
        %1731 = vmatprep.subr.bf16.mxu0 0
        %1732 = vmatpush1.bf16.msra.mxu0 0
        %1733 = vmatprep.subr.bf16.mxu0 0
        %1734 = vmatpush1.bf16.msra.mxu0 0
        %1735 = vmatprep.subr.bf16.mxu0 0
        %1736 = vmatpush1.bf16.msra.mxu0 0
        %1737 = vmatprep.subr.bf16.mxu0 0
        %1738 = vmatpush1.bf16.msra.mxu0 0
        %1739 = vmatprep.mubr.bf16.mxu0 0
        %1740 = vmatmul.mubr.bf16.gmra.mrb[0].mxu0 %v1037
        %v1741 = vpop.f32.mrb[0].mxu0
        %v1742 = vadd.f32 0.0, %v1741
        %v1743 = vpop.f32.mrb[0].mxu0
        %v1744 = vpop.f32.mrb[0].mxu0
        %v1745 = vadd.f32 0.0, %v1744
        %v1746 = vpop.f32.mrb[0].mxu0
        %1747 = vmatprep.mubr.bf16.mxu0 0
        %1748 = vmatmul.mubr.bf16.gmra.mrb[0].mxu0 %v1040
        %v1749 = vpop.f32.mrb[0].mxu0
        %v1750 = vadd.f32 0.0, %v1749
        %v1751 = vpop.f32.mrb[0].mxu0
        %v1752 = vpop.f32.mrb[0].mxu0
        %v1753 = vadd.f32 0.0, %v1752
        %v1754 = vpop.f32.mrb[0].mxu0
        %1755 = vmatprep.mubr.bf16.mxu0 0
        %1756 = vmatmul.mubr.bf16.gmra.mrb[0].mxu0 %v1043
        %v1757 = vpop.f32.mrb[0].mxu0
        %v1758 = vadd.f32 0.0, %v1757
        %v1759 = vpop.f32.mrb[0].mxu0
        %v1760 = vpop.f32.mrb[0].mxu0
        %v1761 = vadd.f32 0.0, %v1760
        %v1762 = vpop.f32.mrb[0].mxu0
        %1763 = vmatprep.mubr.bf16.mxu0 0
        %1764 = vmatmul.mubr.bf16.gmra.mrb[0].mxu0 %v1046
        %v1765 = vpop.f32.mrb[0].mxu0
        %v1766 = vadd.f32 0.0, %v1765
        %v1767 = vpop.f32.mrb[0].mxu0
        %v1768 = vpop.f32.mrb[0].mxu0
        %v1769 = vadd.f32 0.0, %v1768
        %v1770 = vpop.f32.mrb[0].mxu0
        %1771 = vmatprep.mubr.bf16.mxu0 0
        %1772 = vmatmul.mubr.bf16.gmra.mrb[0].mxu0 %v1049
        %v1773 = vpop.f32.mrb[0].mxu0
        %v1774 = vadd.f32 0.0, %v1773
        %v1775 = vpop.f32.mrb[0].mxu0
        %v1776 = vpop.f32.mrb[0].mxu0
        %v1777 = vadd.f32 0.0, %v1776
        %v1778 = vpop.f32.mrb[0].mxu0
        %1779 = vmatprep.mubr.bf16.mxu0 0
        %1780 = vmatmul.mubr.bf16.gmra.mrb[0].mxu0 %v1052
        %v1781 = vpop.f32.mrb[0].mxu0
        %v1782 = vadd.f32 0.0, %v1781
        %v1783 = vpop.f32.mrb[0].mxu0
        %v1784 = vpop.f32.mrb[0].mxu0
        %v1785 = vadd.f32 0.0, %v1784
        %v1786 = vpop.f32.mrb[0].mxu0
        %1787 = vmatprep.mubr.bf16.mxu0 0
        %1788 = vmatmul.mubr.bf16.gmra.mrb[0].mxu0 %v1055
        %v1789 = vpop.f32.mrb[0].mxu0
        %v1790 = vadd.f32 0.0, %v1789
        %v1791 = vpop.f32.mrb[0].mxu0
        %v1792 = vpop.f32.mrb[0].mxu0
        %v1793 = vadd.f32 0.0, %v1792
        %v1794 = vpop.f32.mrb[0].mxu0
        %1795 = vmatprep.mubr.bf16.mxu0 0
        %1796 = vmatmul.mubr.bf16.gmra.mrb[0].mxu0 %v1058
        %v1797 = vpop.f32.mrb[0].mxu0
        %v1798 = vadd.f32 0.0, %v1797
        %v1799 = vpop.f32.mrb[0].mxu0
        %v1800 = vpop.f32.mrb[0].mxu0
        %v1801 = vadd.f32 0.0, %v1800
        %v1802 = vpop.f32.mrb[0].mxu0
        %1803 = vmatprep.mubr.bf16.mxu0 0
        %1804 = vmatmul.mubr.bf16.gmra.mrb[0].mxu0 %v1061
        %v1805 = vpop.f32.mrb[0].mxu0
        %v1806 = vadd.f32 0.0, %v1805
        %v1807 = vpop.f32.mrb[0].mxu0
        %v1808 = vpop.f32.mrb[0].mxu0
        %v1809 = vadd.f32 0.0, %v1808
        %v1810 = vpop.f32.mrb[0].mxu0
        %1811 = vmatprep.mubr.bf16.mxu0 0
        %1812 = vmatmul.mubr.bf16.gmra.mrb[0].mxu0 %v1064
        %v1813 = vpop.f32.mrb[0].mxu0
        %v1814 = vadd.f32 0.0, %v1813
        %v1815 = vpop.f32.mrb[0].mxu0
        %v1816 = vpop.f32.mrb[0].mxu0
        %v1817 = vadd.f32 0.0, %v1816
        %v1818 = vpop.f32.mrb[0].mxu0
        %1819 = vmatprep.mubr.bf16.mxu0 0
        %1820 = vmatmul.mubr.bf16.gmra.mrb[0].mxu0 %v1067
        %v1821 = vpop.f32.mrb[0].mxu0
        %v1822 = vadd.f32 0.0, %v1821
        %v1823 = vpop.f32.mrb[0].mxu0
        %v1824 = vpop.f32.mrb[0].mxu0
        %v1825 = vadd.f32 0.0, %v1824
        %v1826 = vpop.f32.mrb[0].mxu0
        %1827 = vmatprep.mubr.bf16.mxu0 0
        %1828 = vmatmul.mubr.bf16.gmra.mrb[0].mxu0 %v1070
        %v1829 = vpop.f32.mrb[0].mxu0
        %v1830 = vadd.f32 0.0, %v1829
        %v1831 = vpop.f32.mrb[0].mxu0
        %v1832 = vpop.f32.mrb[0].mxu0
        %v1833 = vadd.f32 0.0, %v1832
        %v1834 = vpop.f32.mrb[0].mxu0
        %1835 = vmatprep.mubr.bf16.mxu0 0
        %1836 = vmatmul.mubr.bf16.gmra.mrb[0].mxu0 %v1073
        %v1837 = vpop.f32.mrb[0].mxu0
        %v1838 = vadd.f32 0.0, %v1837
        %v1839 = vpop.f32.mrb[0].mxu0
        %v1840 = vpop.f32.mrb[0].mxu0
        %v1841 = vadd.f32 0.0, %v1840
        %v1842 = vpop.f32.mrb[0].mxu0
        %1843 = vmatprep.mubr.bf16.mxu0 0
        %1844 = vmatmul.mubr.bf16.gmra.mrb[0].mxu0 %v1076
        %v1845 = vpop.f32.mrb[0].mxu0
        %v1846 = vadd.f32 0.0, %v1845
        %v1847 = vpop.f32.mrb[0].mxu0
        %v1848 = vpop.f32.mrb[0].mxu0
        %v1849 = vadd.f32 0.0, %v1848
        %v1850 = vpop.f32.mrb[0].mxu0
        %1851 = vmatprep.mubr.bf16.mxu0 0
        %1852 = vmatmul.mubr.bf16.gmra.mrb[0].mxu0 %v1079
        %v1853 = vpop.f32.mrb[0].mxu0
        %v1854 = vadd.f32 0.0, %v1853
        %v1855 = vpop.f32.mrb[0].mxu0
        %v1856 = vpop.f32.mrb[0].mxu0
        %v1857 = vadd.f32 0.0, %v1856
        %v1858 = vpop.f32.mrb[0].mxu0
        %1859 = vmatprep.mubr.bf16.mxu0 0
        %1860 = vmatmul.mubr.bf16.gmra.mrb[0].mxu0 %v1702
        %v1861 = vpop.f32.mrb[0].mxu0
        %v1862 = vadd.f32 0.0, %v1861
        %v1863 = vpop.f32.mrb[0].mxu0
        %v1864 = vpop.f32.mrb[0].mxu0
        %v1865 = vadd.f32 0.0, %v1864
        %v1866 = vpop.f32.mrb[0].mxu0
        %1867 = vdwg.mxu0
        %v1868 = vadd.f32 %v1659, %v1742
        %v1869 = vadd.f32 %v1660, %v1745
        %v1870 = vadd.f32 %v1661, %v1750
        %v1871 = vadd.f32 %v1662, %v1753
        %v1872 = vadd.f32 %v1663, %v1758
        %v1873 = vadd.f32 %v1664, %v1761
        %v1874 = vadd.f32 %v1665, %v1766
        %v1875 = vadd.f32 %v1666, %v1769
        %v1876 = vadd.f32 %v1667, %v1774
        %v1877 = vadd.f32 %v1668, %v1777
        %v1878 = vadd.f32 %v1669, %v1782
        %v1879 = vadd.f32 %v1670, %v1785
        %v1880 = vadd.f32 %v1671, %v1790
        %v1881 = vadd.f32 %v1672, %v1793
        %v1882 = vadd.f32 %v1673, %v1798
        %v1883 = vadd.f32 %v1674, %v1801
        %v1884 = vadd.f32 %v1675, %v1806
        %v1885 = vadd.f32 %v1676, %v1809
        %v1886 = vadd.f32 %v1677, %v1814
        %v1887 = vadd.f32 %v1678, %v1817
        %v1888 = vadd.f32 %v1679, %v1822
        %v1889 = vadd.f32 %v1680, %v1825
        %v1890 = vadd.f32 %v1681, %v1830
        %v1891 = vadd.f32 %v1682, %v1833
        %v1892 = vadd.f32 %v1683, %v1838
        %v1893 = vadd.f32 %v1684, %v1841
        %v1894 = vadd.f32 %v1685, %v1846
        %v1895 = vadd.f32 %v1686, %v1849
        %v1896 = vadd.f32 %v1687, %v1854
        %v1897 = vadd.f32 %v1688, %v1857
        %v1898 = vadd.f32 %v1689, %v1862
        %v1899 = vadd.f32 %v1690, %v1865
        %v1900 = vpack.c.bf16 %v275, %v274
        %s1901 = scalar_lea.vmem %s1, 12
        %v1902 = vld [vmem:[%s1901] sm:$0x3]
        %v1904 = vsel %vm473, %v1900, 0
        %v1907 = vand.u32 %v1902, %v525
        %1909 = vmatprep.subr.bf16.mxu0 0
        %1910 = vmatpush1.bf16.msra.mxu0 %v1907
        %1911 = vmatprep.subr.bf16.mxu0 0
        %1912 = vmatpush1.bf16.msra.mxu0 0
        %1913 = vmatprep.subr.bf16.mxu0 0
        %1914 = vmatpush1.bf16.msra.mxu0 0
        %1915 = vmatprep.subr.bf16.mxu0 0
        %1916 = vmatpush1.bf16.msra.mxu0 0
        %1917 = vmatprep.subr.bf16.mxu0 0
        %1918 = vmatpush1.bf16.msra.mxu0 0
        %1919 = vmatprep.subr.bf16.mxu0 0
        %1920 = vmatpush1.bf16.msra.mxu0 0
        %1921 = vmatprep.subr.bf16.mxu0 0
        %1922 = vmatpush1.bf16.msra.mxu0 0
        %1923 = vmatprep.subr.bf16.mxu0 0
        %1924 = vmatpush1.bf16.msra.mxu0 0
        %1925 = vmatprep.subr.bf16.mxu0 0
        %1926 = vmatpush1.bf16.msra.mxu0 0
        %1927 = vmatprep.subr.bf16.mxu0 0
        %1928 = vmatpush1.bf16.msra.mxu0 0
        %1929 = vmatprep.subr.bf16.mxu0 0
        %1930 = vmatpush1.bf16.msra.mxu0 0
        %1931 = vmatprep.subr.bf16.mxu0 0
        %1932 = vmatpush1.bf16.msra.mxu0 0
        %1933 = vmatprep.subr.bf16.mxu0 0
        %1934 = vmatpush1.bf16.msra.mxu0 0
        %1935 = vmatprep.subr.bf16.mxu0 0
        %1936 = vmatpush1.bf16.msra.mxu0 0
        %1937 = vmatprep.subr.bf16.mxu0 0
        %1938 = vmatpush1.bf16.msra.mxu0 0
        %1939 = vmatprep.subr.bf16.mxu0 0
        %1940 = vmatpush1.bf16.msra.mxu0 0
        %1941 = vmatprep.mubr.bf16.mxu0 0
        %1942 = vmatmul.mubr.bf16.gmra.mrb[0].mxu0 %v697
        %v1943 = vpop.f32.mrb[0].mxu0
        %v1944 = vadd.f32 0.0, %v1943
        %v1945 = vpop.f32.mrb[0].mxu0
        %v1946 = vpop.f32.mrb[0].mxu0
        %v1947 = vadd.f32 0.0, %v1946
        %v1948 = vpop.f32.mrb[0].mxu0
        %1949 = vmatprep.mubr.bf16.mxu0 0
        %1950 = vmatmul.mubr.bf16.gmra.mrb[0].mxu0 %v700
        %v1951 = vpop.f32.mrb[0].mxu0
        %v1952 = vadd.f32 0.0, %v1951
        %v1953 = vpop.f32.mrb[0].mxu0
        %v1954 = vpop.f32.mrb[0].mxu0
        %v1955 = vadd.f32 0.0, %v1954
        %v1956 = vpop.f32.mrb[0].mxu0
        %1957 = vmatprep.mubr.bf16.mxu0 0
        %1958 = vmatmul.mubr.bf16.gmra.mrb[0].mxu0 %v703
        %v1959 = vpop.f32.mrb[0].mxu0
        %v1960 = vadd.f32 0.0, %v1959
        %v1961 = vpop.f32.mrb[0].mxu0
        %v1962 = vpop.f32.mrb[0].mxu0
        %v1963 = vadd.f32 0.0, %v1962
        %v1964 = vpop.f32.mrb[0].mxu0
        %1965 = vmatprep.mubr.bf16.mxu0 0
        %1966 = vmatmul.mubr.bf16.gmra.mrb[0].mxu0 %v706
        %v1967 = vpop.f32.mrb[0].mxu0
        %v1968 = vadd.f32 0.0, %v1967
        %v1969 = vpop.f32.mrb[0].mxu0
        %v1970 = vpop.f32.mrb[0].mxu0
        %v1971 = vadd.f32 0.0, %v1970
        %v1972 = vpop.f32.mrb[0].mxu0
        %1973 = vmatprep.mubr.bf16.mxu0 0
        %1974 = vmatmul.mubr.bf16.gmra.mrb[0].mxu0 %v709
        %v1975 = vpop.f32.mrb[0].mxu0
        %v1976 = vadd.f32 0.0, %v1975
        %v1977 = vpop.f32.mrb[0].mxu0
        %v1978 = vpop.f32.mrb[0].mxu0
        %v1979 = vadd.f32 0.0, %v1978
        %v1980 = vpop.f32.mrb[0].mxu0
        %1981 = vmatprep.mubr.bf16.mxu0 0
        %1982 = vmatmul.mubr.bf16.gmra.mrb[0].mxu0 %v712
        %v1983 = vpop.f32.mrb[0].mxu0
        %v1984 = vadd.f32 0.0, %v1983
        %v1985 = vpop.f32.mrb[0].mxu0
        %v1986 = vpop.f32.mrb[0].mxu0
        %v1987 = vadd.f32 0.0, %v1986
        %v1988 = vpop.f32.mrb[0].mxu0
        %1989 = vmatprep.mubr.bf16.mxu0 0
        %1990 = vmatmul.mubr.bf16.gmra.mrb[0].mxu0 %v715
        %v1991 = vpop.f32.mrb[0].mxu0
        %v1992 = vadd.f32 0.0, %v1991
        %v1993 = vpop.f32.mrb[0].mxu0
        %v1994 = vpop.f32.mrb[0].mxu0
        %v1995 = vadd.f32 0.0, %v1994
        %v1996 = vpop.f32.mrb[0].mxu0
        %1997 = vmatprep.mubr.bf16.mxu0 0
        %1998 = vmatmul.mubr.bf16.gmra.mrb[0].mxu0 %v718
        %v1999 = vpop.f32.mrb[0].mxu0
        %v2000 = vadd.f32 0.0, %v1999
        %v2001 = vpop.f32.mrb[0].mxu0
        %v2002 = vpop.f32.mrb[0].mxu0
        %v2003 = vadd.f32 0.0, %v2002
        %v2004 = vpop.f32.mrb[0].mxu0
        %2005 = vmatprep.mubr.bf16.mxu0 0
        %2006 = vmatmul.mubr.bf16.gmra.mrb[0].mxu0 %v721
        %v2007 = vpop.f32.mrb[0].mxu0
        %v2008 = vadd.f32 0.0, %v2007
        %v2009 = vpop.f32.mrb[0].mxu0
        %v2010 = vpop.f32.mrb[0].mxu0
        %v2011 = vadd.f32 0.0, %v2010
        %v2012 = vpop.f32.mrb[0].mxu0
        %2013 = vmatprep.mubr.bf16.mxu0 0
        %2014 = vmatmul.mubr.bf16.gmra.mrb[0].mxu0 %v724
        %v2015 = vpop.f32.mrb[0].mxu0
        %v2016 = vadd.f32 0.0, %v2015
        %v2017 = vpop.f32.mrb[0].mxu0
        %v2018 = vpop.f32.mrb[0].mxu0
        %v2019 = vadd.f32 0.0, %v2018
        %v2020 = vpop.f32.mrb[0].mxu0
        %2021 = vmatprep.mubr.bf16.mxu0 0
        %2022 = vmatmul.mubr.bf16.gmra.mrb[0].mxu0 %v727
        %v2023 = vpop.f32.mrb[0].mxu0
        %v2024 = vadd.f32 0.0, %v2023
        %v2025 = vpop.f32.mrb[0].mxu0
        %v2026 = vpop.f32.mrb[0].mxu0
        %v2027 = vadd.f32 0.0, %v2026
        %v2028 = vpop.f32.mrb[0].mxu0
        %2029 = vmatprep.mubr.bf16.mxu0 0
        %2030 = vmatmul.mubr.bf16.gmra.mrb[0].mxu0 %v730
        %v2031 = vpop.f32.mrb[0].mxu0
        %v2032 = vadd.f32 0.0, %v2031
        %v2033 = vpop.f32.mrb[0].mxu0
        %v2034 = vpop.f32.mrb[0].mxu0
        %v2035 = vadd.f32 0.0, %v2034
        %v2036 = vpop.f32.mrb[0].mxu0
        %2037 = vmatprep.mubr.bf16.mxu0 0
        %2038 = vmatmul.mubr.bf16.gmra.mrb[0].mxu0 %v733
        %v2039 = vpop.f32.mrb[0].mxu0
        %v2040 = vadd.f32 0.0, %v2039
        %v2041 = vpop.f32.mrb[0].mxu0
        %v2042 = vpop.f32.mrb[0].mxu0
        %v2043 = vadd.f32 0.0, %v2042
        %v2044 = vpop.f32.mrb[0].mxu0
        %2045 = vmatprep.mubr.bf16.mxu0 0
        %2046 = vmatmul.mubr.bf16.gmra.mrb[0].mxu0 %v736
        %v2047 = vpop.f32.mrb[0].mxu0
        %v2048 = vadd.f32 0.0, %v2047
        %v2049 = vpop.f32.mrb[0].mxu0
        %v2050 = vpop.f32.mrb[0].mxu0
        %v2051 = vadd.f32 0.0, %v2050
        %v2052 = vpop.f32.mrb[0].mxu0
        %2053 = vmatprep.mubr.bf16.mxu0 0
        %2054 = vmatmul.mubr.bf16.gmra.mrb[0].mxu0 %v1281
        %v2055 = vpop.f32.mrb[0].mxu0
        %v2056 = vadd.f32 0.0, %v2055
        %v2057 = vpop.f32.mrb[0].mxu0
        %v2058 = vpop.f32.mrb[0].mxu0
        %v2059 = vadd.f32 0.0, %v2058
        %v2060 = vpop.f32.mrb[0].mxu0
        %2061 = vmatprep.mubr.bf16.mxu0 0
        %2062 = vmatmul.mubr.bf16.gmra.mrb[0].mxu0 %v1904
        %v2063 = vpop.f32.mrb[0].mxu0
        %v2064 = vadd.f32 0.0, %v2063
        %v2065 = vpop.f32.mrb[0].mxu0
        %v2066 = vpop.f32.mrb[0].mxu0
        %v2067 = vadd.f32 0.0, %v2066
        %v2068 = vpop.f32.mrb[0].mxu0
        %2069 = vdwg.mxu0
        %v2070 = vadd.f32 %v1868, %v1944
        %v2071 = vadd.f32 %v1869, %v1947
        %v2072 = vadd.f32 %v1870, %v1952
        %v2073 = vadd.f32 %v1871, %v1955
        %v2074 = vadd.f32 %v1872, %v1960
        %v2075 = vadd.f32 %v1873, %v1963
        %v2076 = vadd.f32 %v1874, %v1968
        %v2077 = vadd.f32 %v1875, %v1971
        %v2078 = vadd.f32 %v1876, %v1976
        %v2079 = vadd.f32 %v1877, %v1979
        %v2080 = vadd.f32 %v1878, %v1984
        %v2081 = vadd.f32 %v1879, %v1987
        %v2082 = vadd.f32 %v1880, %v1992
        %v2083 = vadd.f32 %v1881, %v1995
        %v2084 = vadd.f32 %v1882, %v2000
        %v2085 = vadd.f32 %v1883, %v2003
        %v2086 = vadd.f32 %v1884, %v2008
        %v2087 = vadd.f32 %v1885, %v2011
        %v2088 = vadd.f32 %v1886, %v2016
        %v2089 = vadd.f32 %v1887, %v2019
        %v2090 = vadd.f32 %v1888, %v2024
        %v2091 = vadd.f32 %v1889, %v2027
        %v2092 = vadd.f32 %v1890, %v2032
        %v2093 = vadd.f32 %v1891, %v2035
        %v2094 = vadd.f32 %v1892, %v2040
        %v2095 = vadd.f32 %v1893, %v2043
        %v2096 = vadd.f32 %v1894, %v2048
        %v2097 = vadd.f32 %v1895, %v2051
        %v2098 = vadd.f32 %v1896, %v2056
        %v2099 = vadd.f32 %v1897, %v2059
        %v2100 = vadd.f32 %v1898, %v2064
        %v2101 = vadd.f32 %v1899, %v2067
        %v2105 = vrot.slane %v274, 1
        %v2106 = vrot.slane %v275, 1
        %v2107 = vsel %vm342, %v2105, %v2106
        %v2108 = vrot.slane %v276, 1
        %v2109 = vsel %vm342, %v2106, %v2108
        %v2112 = vpack.c.bf16 %v2109, %v2107
        %s2113 = scalar_lea.vmem %s1, 14
        %v2114 = vld [vmem:[%s2113] sm:$0x3]
        %v2116 = vsel %vm473, %v2112, 0
        %v2119 = vand.u32 %v2114, %v525
        %2121 = vmatprep.subr.bf16.mxu0 0
        %2122 = vmatpush1.bf16.msra.mxu0 %v2119
        %2123 = vmatprep.subr.bf16.mxu0 0
        %2124 = vmatpush1.bf16.msra.mxu0 0
        %2125 = vmatprep.subr.bf16.mxu0 0
        %2126 = vmatpush1.bf16.msra.mxu0 0
        %2127 = vmatprep.subr.bf16.mxu0 0
        %2128 = vmatpush1.bf16.msra.mxu0 0
        %2129 = vmatprep.subr.bf16.mxu0 0
        %2130 = vmatpush1.bf16.msra.mxu0 0
        %2131 = vmatprep.subr.bf16.mxu0 0
        %2132 = vmatpush1.bf16.msra.mxu0 0
        %2133 = vmatprep.subr.bf16.mxu0 0
        %2134 = vmatpush1.bf16.msra.mxu0 0
        %2135 = vmatprep.subr.bf16.mxu0 0
        %2136 = vmatpush1.bf16.msra.mxu0 0
        %2137 = vmatprep.subr.bf16.mxu0 0
        %2138 = vmatpush1.bf16.msra.mxu0 0
        %2139 = vmatprep.subr.bf16.mxu0 0
        %2140 = vmatpush1.bf16.msra.mxu0 0
        %2141 = vmatprep.subr.bf16.mxu0 0
        %2142 = vmatpush1.bf16.msra.mxu0 0
        %2143 = vmatprep.subr.bf16.mxu0 0
        %2144 = vmatpush1.bf16.msra.mxu0 0
        %2145 = vmatprep.subr.bf16.mxu0 0
        %2146 = vmatpush1.bf16.msra.mxu0 0
        %2147 = vmatprep.subr.bf16.mxu0 0
        %2148 = vmatpush1.bf16.msra.mxu0 0
        %2149 = vmatprep.subr.bf16.mxu0 0
        %2150 = vmatpush1.bf16.msra.mxu0 0
        %2151 = vmatprep.subr.bf16.mxu0 0
        %2152 = vmatpush1.bf16.msra.mxu0 0
        %2153 = vmatprep.mubr.bf16.mxu0 0
        %2154 = vmatmul.mubr.bf16.gmra.mrb[0].mxu0 %v481
        %v2155 = vpop.f32.mrb[0].mxu0
        %v2156 = vadd.f32 0.0, %v2155
        %v2157 = vpop.f32.mrb[0].mxu0
        %v2158 = vpop.f32.mrb[0].mxu0
        %v2159 = vadd.f32 0.0, %v2158
        %v2160 = vpop.f32.mrb[0].mxu0
        %2161 = vmatprep.mubr.bf16.mxu0 0
        %2162 = vmatmul.mubr.bf16.gmra.mrb[0].mxu0 %v484
        %v2163 = vpop.f32.mrb[0].mxu0
        %v2164 = vadd.f32 0.0, %v2163
        %v2165 = vpop.f32.mrb[0].mxu0
        %v2166 = vpop.f32.mrb[0].mxu0
        %v2167 = vadd.f32 0.0, %v2166
        %v2168 = vpop.f32.mrb[0].mxu0
        %2169 = vmatprep.mubr.bf16.mxu0 0
        %2170 = vmatmul.mubr.bf16.gmra.mrb[0].mxu0 %v487
        %v2171 = vpop.f32.mrb[0].mxu0
        %v2172 = vadd.f32 0.0, %v2171
        %v2173 = vpop.f32.mrb[0].mxu0
        %v2174 = vpop.f32.mrb[0].mxu0
        %v2175 = vadd.f32 0.0, %v2174
        %v2176 = vpop.f32.mrb[0].mxu0
        %2177 = vmatprep.mubr.bf16.mxu0 0
        %2178 = vmatmul.mubr.bf16.gmra.mrb[0].mxu0 %v490
        %v2179 = vpop.f32.mrb[0].mxu0
        %v2180 = vadd.f32 0.0, %v2179
        %v2181 = vpop.f32.mrb[0].mxu0
        %v2182 = vpop.f32.mrb[0].mxu0
        %v2183 = vadd.f32 0.0, %v2182
        %v2184 = vpop.f32.mrb[0].mxu0
        %2185 = vmatprep.mubr.bf16.mxu0 0
        %2186 = vmatmul.mubr.bf16.gmra.mrb[0].mxu0 %v493
        %v2187 = vpop.f32.mrb[0].mxu0
        %v2188 = vadd.f32 0.0, %v2187
        %v2189 = vpop.f32.mrb[0].mxu0
        %v2190 = vpop.f32.mrb[0].mxu0
        %v2191 = vadd.f32 0.0, %v2190
        %v2192 = vpop.f32.mrb[0].mxu0
        %2193 = vmatprep.mubr.bf16.mxu0 0
        %2194 = vmatmul.mubr.bf16.gmra.mrb[0].mxu0 %v496
        %v2195 = vpop.f32.mrb[0].mxu0
        %v2196 = vadd.f32 0.0, %v2195
        %v2197 = vpop.f32.mrb[0].mxu0
        %v2198 = vpop.f32.mrb[0].mxu0
        %v2199 = vadd.f32 0.0, %v2198
        %v2200 = vpop.f32.mrb[0].mxu0
        %2201 = vmatprep.mubr.bf16.mxu0 0
        %2202 = vmatmul.mubr.bf16.gmra.mrb[0].mxu0 %v499
        %v2203 = vpop.f32.mrb[0].mxu0
        %v2204 = vadd.f32 0.0, %v2203
        %v2205 = vpop.f32.mrb[0].mxu0
        %v2206 = vpop.f32.mrb[0].mxu0
        %v2207 = vadd.f32 0.0, %v2206
        %v2208 = vpop.f32.mrb[0].mxu0
        %2209 = vmatprep.mubr.bf16.mxu0 0
        %2210 = vmatmul.mubr.bf16.gmra.mrb[0].mxu0 %v502
        %v2211 = vpop.f32.mrb[0].mxu0
        %v2212 = vadd.f32 0.0, %v2211
        %v2213 = vpop.f32.mrb[0].mxu0
        %v2214 = vpop.f32.mrb[0].mxu0
        %v2215 = vadd.f32 0.0, %v2214
        %v2216 = vpop.f32.mrb[0].mxu0
        %2217 = vmatprep.mubr.bf16.mxu0 0
        %2218 = vmatmul.mubr.bf16.gmra.mrb[0].mxu0 %v505
        %v2219 = vpop.f32.mrb[0].mxu0
        %v2220 = vadd.f32 0.0, %v2219
        %v2221 = vpop.f32.mrb[0].mxu0
        %v2222 = vpop.f32.mrb[0].mxu0
        %v2223 = vadd.f32 0.0, %v2222
        %v2224 = vpop.f32.mrb[0].mxu0
        %2225 = vmatprep.mubr.bf16.mxu0 0
        %2226 = vmatmul.mubr.bf16.gmra.mrb[0].mxu0 %v508
        %v2227 = vpop.f32.mrb[0].mxu0
        %v2228 = vadd.f32 0.0, %v2227
        %v2229 = vpop.f32.mrb[0].mxu0
        %v2230 = vpop.f32.mrb[0].mxu0
        %v2231 = vadd.f32 0.0, %v2230
        %v2232 = vpop.f32.mrb[0].mxu0
        %2233 = vmatprep.mubr.bf16.mxu0 0
        %2234 = vmatmul.mubr.bf16.gmra.mrb[0].mxu0 %v511
        %v2235 = vpop.f32.mrb[0].mxu0
        %v2236 = vadd.f32 0.0, %v2235
        %v2237 = vpop.f32.mrb[0].mxu0
        %v2238 = vpop.f32.mrb[0].mxu0
        %v2239 = vadd.f32 0.0, %v2238
        %v2240 = vpop.f32.mrb[0].mxu0
        %2241 = vmatprep.mubr.bf16.mxu0 0
        %2242 = vmatmul.mubr.bf16.gmra.mrb[0].mxu0 %v514
        %v2243 = vpop.f32.mrb[0].mxu0
        %v2244 = vadd.f32 0.0, %v2243
        %v2245 = vpop.f32.mrb[0].mxu0
        %v2246 = vpop.f32.mrb[0].mxu0
        %v2247 = vadd.f32 0.0, %v2246
        %v2248 = vpop.f32.mrb[0].mxu0
        %2249 = vmatprep.mubr.bf16.mxu0 0
        %2250 = vmatmul.mubr.bf16.gmra.mrb[0].mxu0 %v517
        %v2251 = vpop.f32.mrb[0].mxu0
        %v2252 = vadd.f32 0.0, %v2251
        %v2253 = vpop.f32.mrb[0].mxu0
        %v2254 = vpop.f32.mrb[0].mxu0
        %v2255 = vadd.f32 0.0, %v2254
        %v2256 = vpop.f32.mrb[0].mxu0
        %2257 = vmatprep.mubr.bf16.mxu0 0
        %2258 = vmatmul.mubr.bf16.gmra.mrb[0].mxu0 %v520
        %v2259 = vpop.f32.mrb[0].mxu0
        %v2260 = vadd.f32 0.0, %v2259
        %v2261 = vpop.f32.mrb[0].mxu0
        %v2262 = vpop.f32.mrb[0].mxu0
        %v2263 = vadd.f32 0.0, %v2262
        %v2264 = vpop.f32.mrb[0].mxu0
        %2265 = vmatprep.mubr.bf16.mxu0 0
        %2266 = vmatmul.mubr.bf16.gmra.mrb[0].mxu0 %v1493
        %v2267 = vpop.f32.mrb[0].mxu0
        %v2268 = vadd.f32 0.0, %v2267
        %v2269 = vpop.f32.mrb[0].mxu0
        %v2270 = vpop.f32.mrb[0].mxu0
        %v2271 = vadd.f32 0.0, %v2270
        %v2272 = vpop.f32.mrb[0].mxu0
        %2273 = vmatprep.mubr.bf16.mxu0 0
        %2274 = vmatmul.mubr.bf16.gmra.mrb[0].mxu0 %v2116
        %v2275 = vpop.f32.mrb[0].mxu0
        %v2276 = vadd.f32 0.0, %v2275
        %v2277 = vpop.f32.mrb[0].mxu0
        %v2278 = vpop.f32.mrb[0].mxu0
        %v2279 = vadd.f32 0.0, %v2278
        %v2280 = vpop.f32.mrb[0].mxu0
        %2281 = vdwg.mxu0
        %v2282 = vadd.f32 %v2070, %v2156
        %v2283 = vadd.f32 %v2071, %v2159
        %v2284 = vadd.f32 %v2072, %v2164
        %v2285 = vadd.f32 %v2073, %v2167
        %v2286 = vadd.f32 %v2074, %v2172
        %v2287 = vadd.f32 %v2075, %v2175
        %v2288 = vadd.f32 %v2076, %v2180
        %v2289 = vadd.f32 %v2077, %v2183
        %v2290 = vadd.f32 %v2078, %v2188
        %v2291 = vadd.f32 %v2079, %v2191
        %v2292 = vadd.f32 %v2080, %v2196
        %v2293 = vadd.f32 %v2081, %v2199
        %v2294 = vadd.f32 %v2082, %v2204
        %v2295 = vadd.f32 %v2083, %v2207
        %v2296 = vadd.f32 %v2084, %v2212
        %v2297 = vadd.f32 %v2085, %v2215
        %v2298 = vadd.f32 %v2086, %v2220
        %v2299 = vadd.f32 %v2087, %v2223
        %v2300 = vadd.f32 %v2088, %v2228
        %v2301 = vadd.f32 %v2089, %v2231
        %v2302 = vadd.f32 %v2090, %v2236
        %v2303 = vadd.f32 %v2091, %v2239
        %v2304 = vadd.f32 %v2092, %v2244
        %v2305 = vadd.f32 %v2093, %v2247
        %v2306 = vadd.f32 %v2094, %v2252
        %v2307 = vadd.f32 %v2095, %v2255
        %v2308 = vadd.f32 %v2096, %v2260
        %v2309 = vadd.f32 %v2097, %v2263
        %v2310 = vadd.f32 %v2098, %v2268
        %v2311 = vadd.f32 %v2099, %v2271
        %v2312 = vadd.f32 %v2100, %v2276
        %v2313 = vadd.f32 %v2101, %v2279
        %v2314 = vrot.slane %v274, 2
        %v2315 = vrot.slane %v275, 2
        %v2316 = vsel %vm902, %v2314, %v2315
        %v2317 = vrot.slane %v276, 2
        %v2318 = vsel %vm902, %v2315, %v2317
        %v2321 = vpack.c.bf16 %v2318, %v2316
        %s2322 = scalar_lea.vmem %s1, 16
        %v2323 = vld [vmem:[%s2322] sm:$0x3]
        %v2325 = vsel %vm473, %v2321, 0
        %v2328 = vand.u32 %v2323, %v525
        %2330 = vmatprep.subr.bf16.mxu0 0
        %2331 = vmatpush1.bf16.msra.mxu0 %v2328
        %2332 = vmatprep.subr.bf16.mxu0 0
        %2333 = vmatpush1.bf16.msra.mxu0 0
        %2334 = vmatprep.subr.bf16.mxu0 0
        %2335 = vmatpush1.bf16.msra.mxu0 0
        %2336 = vmatprep.subr.bf16.mxu0 0
        %2337 = vmatpush1.bf16.msra.mxu0 0
        %2338 = vmatprep.subr.bf16.mxu0 0
        %2339 = vmatpush1.bf16.msra.mxu0 0
        %2340 = vmatprep.subr.bf16.mxu0 0
        %2341 = vmatpush1.bf16.msra.mxu0 0
        %2342 = vmatprep.subr.bf16.mxu0 0
        %2343 = vmatpush1.bf16.msra.mxu0 0
        %2344 = vmatprep.subr.bf16.mxu0 0
        %2345 = vmatpush1.bf16.msra.mxu0 0
        %2346 = vmatprep.subr.bf16.mxu0 0
        %2347 = vmatpush1.bf16.msra.mxu0 0
        %2348 = vmatprep.subr.bf16.mxu0 0
        %2349 = vmatpush1.bf16.msra.mxu0 0
        %2350 = vmatprep.subr.bf16.mxu0 0
        %2351 = vmatpush1.bf16.msra.mxu0 0
        %2352 = vmatprep.subr.bf16.mxu0 0
        %2353 = vmatpush1.bf16.msra.mxu0 0
        %2354 = vmatprep.subr.bf16.mxu0 0
        %2355 = vmatpush1.bf16.msra.mxu0 0
        %2356 = vmatprep.subr.bf16.mxu0 0
        %2357 = vmatpush1.bf16.msra.mxu0 0
        %2358 = vmatprep.subr.bf16.mxu0 0
        %2359 = vmatpush1.bf16.msra.mxu0 0
        %2360 = vmatprep.subr.bf16.mxu0 0
        %2361 = vmatpush1.bf16.msra.mxu0 0
        %2362 = vmatprep.mubr.bf16.mxu0 0
        %2363 = vmatmul.mubr.bf16.gmra.mrb[0].mxu0 %v1040
        %v2364 = vpop.f32.mrb[0].mxu0
        %v2365 = vadd.f32 0.0, %v2364
        %v2366 = vpop.f32.mrb[0].mxu0
        %v2367 = vpop.f32.mrb[0].mxu0
        %v2368 = vadd.f32 0.0, %v2367
        %v2369 = vpop.f32.mrb[0].mxu0
        %2370 = vmatprep.mubr.bf16.mxu0 0
        %2371 = vmatmul.mubr.bf16.gmra.mrb[0].mxu0 %v1043
        %v2372 = vpop.f32.mrb[0].mxu0
        %v2373 = vadd.f32 0.0, %v2372
        %v2374 = vpop.f32.mrb[0].mxu0
        %v2375 = vpop.f32.mrb[0].mxu0
        %v2376 = vadd.f32 0.0, %v2375
        %v2377 = vpop.f32.mrb[0].mxu0
        %2378 = vmatprep.mubr.bf16.mxu0 0
        %2379 = vmatmul.mubr.bf16.gmra.mrb[0].mxu0 %v1046
        %v2380 = vpop.f32.mrb[0].mxu0
        %v2381 = vadd.f32 0.0, %v2380
        %v2382 = vpop.f32.mrb[0].mxu0
        %v2383 = vpop.f32.mrb[0].mxu0
        %v2384 = vadd.f32 0.0, %v2383
        %v2385 = vpop.f32.mrb[0].mxu0
        %2386 = vmatprep.mubr.bf16.mxu0 0
        %2387 = vmatmul.mubr.bf16.gmra.mrb[0].mxu0 %v1049
        %v2388 = vpop.f32.mrb[0].mxu0
        %v2389 = vadd.f32 0.0, %v2388
        %v2390 = vpop.f32.mrb[0].mxu0
        %v2391 = vpop.f32.mrb[0].mxu0
        %v2392 = vadd.f32 0.0, %v2391
        %v2393 = vpop.f32.mrb[0].mxu0
        %2394 = vmatprep.mubr.bf16.mxu0 0
        %2395 = vmatmul.mubr.bf16.gmra.mrb[0].mxu0 %v1052
        %v2396 = vpop.f32.mrb[0].mxu0
        %v2397 = vadd.f32 0.0, %v2396
        %v2398 = vpop.f32.mrb[0].mxu0
        %v2399 = vpop.f32.mrb[0].mxu0
        %v2400 = vadd.f32 0.0, %v2399
        %v2401 = vpop.f32.mrb[0].mxu0
        %2402 = vmatprep.mubr.bf16.mxu0 0
        %2403 = vmatmul.mubr.bf16.gmra.mrb[0].mxu0 %v1055
        %v2404 = vpop.f32.mrb[0].mxu0
        %v2405 = vadd.f32 0.0, %v2404
        %v2406 = vpop.f32.mrb[0].mxu0
        %v2407 = vpop.f32.mrb[0].mxu0
        %v2408 = vadd.f32 0.0, %v2407
        %v2409 = vpop.f32.mrb[0].mxu0
        %2410 = vmatprep.mubr.bf16.mxu0 0
        %2411 = vmatmul.mubr.bf16.gmra.mrb[0].mxu0 %v1058
        %v2412 = vpop.f32.mrb[0].mxu0
        %v2413 = vadd.f32 0.0, %v2412
        %v2414 = vpop.f32.mrb[0].mxu0
        %v2415 = vpop.f32.mrb[0].mxu0
        %v2416 = vadd.f32 0.0, %v2415
        %v2417 = vpop.f32.mrb[0].mxu0
        %2418 = vmatprep.mubr.bf16.mxu0 0
        %2419 = vmatmul.mubr.bf16.gmra.mrb[0].mxu0 %v1061
        %v2420 = vpop.f32.mrb[0].mxu0
        %v2421 = vadd.f32 0.0, %v2420
        %v2422 = vpop.f32.mrb[0].mxu0
        %v2423 = vpop.f32.mrb[0].mxu0
        %v2424 = vadd.f32 0.0, %v2423
        %v2425 = vpop.f32.mrb[0].mxu0
        %2426 = vmatprep.mubr.bf16.mxu0 0
        %2427 = vmatmul.mubr.bf16.gmra.mrb[0].mxu0 %v1064
        %v2428 = vpop.f32.mrb[0].mxu0
        %v2429 = vadd.f32 0.0, %v2428
        %v2430 = vpop.f32.mrb[0].mxu0
        %v2431 = vpop.f32.mrb[0].mxu0
        %v2432 = vadd.f32 0.0, %v2431
        %v2433 = vpop.f32.mrb[0].mxu0
        %2434 = vmatprep.mubr.bf16.mxu0 0
        %2435 = vmatmul.mubr.bf16.gmra.mrb[0].mxu0 %v1067
        %v2436 = vpop.f32.mrb[0].mxu0
        %v2437 = vadd.f32 0.0, %v2436
        %v2438 = vpop.f32.mrb[0].mxu0
        %v2439 = vpop.f32.mrb[0].mxu0
        %v2440 = vadd.f32 0.0, %v2439
        %v2441 = vpop.f32.mrb[0].mxu0
        %2442 = vmatprep.mubr.bf16.mxu0 0
        %2443 = vmatmul.mubr.bf16.gmra.mrb[0].mxu0 %v1070
        %v2444 = vpop.f32.mrb[0].mxu0
        %v2445 = vadd.f32 0.0, %v2444
        %v2446 = vpop.f32.mrb[0].mxu0
        %v2447 = vpop.f32.mrb[0].mxu0
        %v2448 = vadd.f32 0.0, %v2447
        %v2449 = vpop.f32.mrb[0].mxu0
        %2450 = vmatprep.mubr.bf16.mxu0 0
        %2451 = vmatmul.mubr.bf16.gmra.mrb[0].mxu0 %v1073
        %v2452 = vpop.f32.mrb[0].mxu0
        %v2453 = vadd.f32 0.0, %v2452
        %v2454 = vpop.f32.mrb[0].mxu0
        %v2455 = vpop.f32.mrb[0].mxu0
        %v2456 = vadd.f32 0.0, %v2455
        %v2457 = vpop.f32.mrb[0].mxu0
        %2458 = vmatprep.mubr.bf16.mxu0 0
        %2459 = vmatmul.mubr.bf16.gmra.mrb[0].mxu0 %v1076
        %v2460 = vpop.f32.mrb[0].mxu0
        %v2461 = vadd.f32 0.0, %v2460
        %v2462 = vpop.f32.mrb[0].mxu0
        %v2463 = vpop.f32.mrb[0].mxu0
        %v2464 = vadd.f32 0.0, %v2463
        %v2465 = vpop.f32.mrb[0].mxu0
        %2466 = vmatprep.mubr.bf16.mxu0 0
        %2467 = vmatmul.mubr.bf16.gmra.mrb[0].mxu0 %v1079
        %v2468 = vpop.f32.mrb[0].mxu0
        %v2469 = vadd.f32 0.0, %v2468
        %v2470 = vpop.f32.mrb[0].mxu0
        %v2471 = vpop.f32.mrb[0].mxu0
        %v2472 = vadd.f32 0.0, %v2471
        %v2473 = vpop.f32.mrb[0].mxu0
        %2474 = vmatprep.mubr.bf16.mxu0 0
        %2475 = vmatmul.mubr.bf16.gmra.mrb[0].mxu0 %v1702
        %v2476 = vpop.f32.mrb[0].mxu0
        %v2477 = vadd.f32 0.0, %v2476
        %v2478 = vpop.f32.mrb[0].mxu0
        %v2479 = vpop.f32.mrb[0].mxu0
        %v2480 = vadd.f32 0.0, %v2479
        %v2481 = vpop.f32.mrb[0].mxu0
        %2482 = vmatprep.mubr.bf16.mxu0 0
        %2483 = vmatmul.mubr.bf16.gmra.mrb[0].mxu0 %v2325
        %v2484 = vpop.f32.mrb[0].mxu0
        %v2485 = vadd.f32 0.0, %v2484
        %v2486 = vpop.f32.mrb[0].mxu0
        %v2487 = vpop.f32.mrb[0].mxu0
        %v2488 = vadd.f32 0.0, %v2487
        %v2489 = vpop.f32.mrb[0].mxu0
        %2490 = vdwg.mxu0
        %v2491 = vadd.f32 %v2282, %v2365
        %v2492 = vadd.f32 %v2283, %v2368
        %v2493 = vadd.f32 %v2284, %v2373
        %v2494 = vadd.f32 %v2285, %v2376
        %v2495 = vadd.f32 %v2286, %v2381
        %v2496 = vadd.f32 %v2287, %v2384
        %v2497 = vadd.f32 %v2288, %v2389
        %v2498 = vadd.f32 %v2289, %v2392
        %v2499 = vadd.f32 %v2290, %v2397
        %v2500 = vadd.f32 %v2291, %v2400
        %v2501 = vadd.f32 %v2292, %v2405
        %v2502 = vadd.f32 %v2293, %v2408
        %v2503 = vadd.f32 %v2294, %v2413
        %v2504 = vadd.f32 %v2295, %v2416
        %v2505 = vadd.f32 %v2296, %v2421
        %v2506 = vadd.f32 %v2297, %v2424
        %v2507 = vadd.f32 %v2298, %v2429
        %v2508 = vadd.f32 %v2299, %v2432
        %v2509 = vadd.f32 %v2300, %v2437
        %v2510 = vadd.f32 %v2301, %v2440
        %v2511 = vadd.f32 %v2302, %v2445
        %v2512 = vadd.f32 %v2303, %v2448
        %v2513 = vadd.f32 %v2304, %v2453
        %v2514 = vadd.f32 %v2305, %v2456
        %v2515 = vadd.f32 %v2306, %v2461
        %v2516 = vadd.f32 %v2307, %v2464
        %v2517 = vadd.f32 %v2308, %v2469
        %v2518 = vadd.f32 %v2309, %v2472
        %v2519 = vadd.f32 %v2310, %v2477
        %v2520 = vadd.f32 %v2311, %v2480
        %v2521 = vadd.f32 %v2312, %v2485
        %v2522 = vadd.f32 %v2313, %v2488
        %v2523 = vld [vmem:[%s2] sm:$0x1]
        %v2525 = vlaneseq
        %v2526 = vshrl.u32 %v2525, 7
        %v2527 = vsub.s32 0, %v2526
        %v2528 = vrot.slane %v2523, %v2527
        %v2530 = vadd.f32 %v2491, %v2528
        %v2531 = vadd.f32 %v2492, %v2528
        %v2532 = vadd.f32 %v2493, %v2528
        %v2533 = vadd.f32 %v2494, %v2528
        %v2534 = vadd.f32 %v2495, %v2528
        %v2535 = vadd.f32 %v2496, %v2528
        %v2536 = vadd.f32 %v2497, %v2528
        %v2537 = vadd.f32 %v2498, %v2528
        %v2538 = vadd.f32 %v2499, %v2528
        %v2539 = vadd.f32 %v2500, %v2528
        %v2540 = vadd.f32 %v2501, %v2528
        %v2541 = vadd.f32 %v2502, %v2528
        %v2542 = vadd.f32 %v2503, %v2528
        %v2543 = vadd.f32 %v2504, %v2528
        %v2544 = vadd.f32 %v2505, %v2528
        %v2545 = vadd.f32 %v2506, %v2528
        %v2546 = vadd.f32 %v2507, %v2528
        %v2547 = vadd.f32 %v2508, %v2528
        %v2548 = vadd.f32 %v2509, %v2528
        %v2549 = vadd.f32 %v2510, %v2528
        %v2550 = vadd.f32 %v2511, %v2528
        %v2551 = vadd.f32 %v2512, %v2528
        %v2552 = vadd.f32 %v2513, %v2528
        %v2553 = vadd.f32 %v2514, %v2528
        %v2554 = vadd.f32 %v2515, %v2528
        %v2555 = vadd.f32 %v2516, %v2528
        %v2556 = vadd.f32 %v2517, %v2528
        %v2557 = vadd.f32 %v2518, %v2528
        %v2558 = vadd.f32 %v2519, %v2528
        %v2559 = vadd.f32 %v2520, %v2528
        %v2560 = vadd.f32 %v2521, %v2528
        %v2561 = vadd.f32 %v2522, %v2528
        %v2562 = vmax.f32 %v2530, 0.0
        %v2563 = vmax.f32 %v2531, 0.0
        %v2564 = vmax.f32 %v2532, 0.0
        %v2565 = vmax.f32 %v2533, 0.0
        %v2566 = vmax.f32 %v2534, 0.0
        %v2567 = vmax.f32 %v2535, 0.0
        %v2568 = vmax.f32 %v2536, 0.0
        %v2569 = vmax.f32 %v2537, 0.0
        %v2570 = vmax.f32 %v2538, 0.0
        %v2571 = vmax.f32 %v2539, 0.0
        %v2572 = vmax.f32 %v2540, 0.0
        %v2573 = vmax.f32 %v2541, 0.0
        %v2574 = vmax.f32 %v2542, 0.0
        %v2575 = vmax.f32 %v2543, 0.0
        %v2576 = vmax.f32 %v2544, 0.0
        %v2577 = vmax.f32 %v2545, 0.0
        %v2578 = vmax.f32 %v2546, 0.0
        %v2579 = vmax.f32 %v2547, 0.0
        %v2580 = vmax.f32 %v2548, 0.0
        %v2581 = vmax.f32 %v2549, 0.0
        %v2582 = vmax.f32 %v2550, 0.0
        %v2583 = vmax.f32 %v2551, 0.0
        %v2584 = vmax.f32 %v2552, 0.0
        %v2585 = vmax.f32 %v2553, 0.0
        %v2586 = vmax.f32 %v2554, 0.0
        %v2587 = vmax.f32 %v2555, 0.0
        %v2588 = vmax.f32 %v2556, 0.0
        %v2589 = vmax.f32 %v2557, 0.0
        %v2590 = vmax.f32 %v2558, 0.0
        %v2591 = vmax.f32 %v2559, 0.0
        %v2592 = vmax.f32 %v2560, 0.0
        %v2593 = vmax.f32 %v2561, 0.0
        %vm2594 = vcmask 261120
        %v2595 = vsel %vm2594, %v2562, 0.0
        %v2596 = vsel %vm2594, %v2563, 0.0
        %v2597 = vadd.f32 %v2595, %v2596
        %v2598 = vsel %vm2594, %v2564, 0.0
        %v2599 = vadd.f32 %v2597, %v2598
        %v2600 = vsel %vm2594, %v2565, 0.0
        %v2601 = vadd.f32 %v2599, %v2600
        %v2602 = vsel %vm2594, %v2566, 0.0
        %v2603 = vadd.f32 %v2601, %v2602
        %v2604 = vsel %vm2594, %v2567, 0.0
        %v2605 = vadd.f32 %v2603, %v2604
        %v2606 = vsel %vm2594, %v2568, 0.0
        %v2607 = vadd.f32 %v2605, %v2606
        %v2608 = vsel %vm2594, %v2569, 0.0
        %v2609 = vadd.f32 %v2607, %v2608
        %v2610 = vsel %vm2594, %v2570, 0.0
        %v2611 = vadd.f32 %v2609, %v2610
        %v2612 = vsel %vm2594, %v2571, 0.0
        %v2613 = vadd.f32 %v2611, %v2612
        %v2614 = vsel %vm2594, %v2572, 0.0
        %v2615 = vadd.f32 %v2613, %v2614
        %v2616 = vsel %vm2594, %v2573, 0.0
        %v2617 = vadd.f32 %v2615, %v2616
        %v2618 = vsel %vm2594, %v2574, 0.0
        %v2619 = vadd.f32 %v2617, %v2618
        %v2620 = vsel %vm2594, %v2575, 0.0
        %v2621 = vadd.f32 %v2619, %v2620
        %v2622 = vsel %vm2594, %v2576, 0.0
        %v2623 = vadd.f32 %v2621, %v2622
        %v2624 = vsel %vm2594, %v2577, 0.0
        %v2625 = vadd.f32 %v2623, %v2624
        %v2626 = vsel %vm2594, %v2578, 0.0
        %v2627 = vadd.f32 %v2625, %v2626
        %v2628 = vsel %vm2594, %v2579, 0.0
        %v2629 = vadd.f32 %v2627, %v2628
        %v2630 = vsel %vm2594, %v2580, 0.0
        %v2631 = vadd.f32 %v2629, %v2630
        %v2632 = vsel %vm2594, %v2581, 0.0
        %v2633 = vadd.f32 %v2631, %v2632
        %v2634 = vsel %vm2594, %v2582, 0.0
        %v2635 = vadd.f32 %v2633, %v2634
        %v2636 = vsel %vm2594, %v2583, 0.0
        %v2637 = vadd.f32 %v2635, %v2636
        %v2638 = vsel %vm2594, %v2584, 0.0
        %v2639 = vadd.f32 %v2637, %v2638
        %v2640 = vsel %vm2594, %v2585, 0.0
        %v2641 = vadd.f32 %v2639, %v2640
        %v2642 = vsel %vm2594, %v2586, 0.0
        %v2643 = vadd.f32 %v2641, %v2642
        %v2644 = vsel %vm2594, %v2587, 0.0
        %v2645 = vadd.f32 %v2643, %v2644
        %v2646 = vsel %vm2594, %v2588, 0.0
        %v2647 = vadd.f32 %v2645, %v2646
        %v2648 = vsel %vm2594, %v2589, 0.0
        %v2649 = vadd.f32 %v2647, %v2648
        %v2650 = vsel %vm2594, %v2590, 0.0
        %v2651 = vadd.f32 %v2649, %v2650
        %v2652 = vsel %vm2594, %v2591, 0.0
        %v2653 = vadd.f32 %v2651, %v2652
        %v2654 = vsel %vm2594, %v2592, 0.0
        %v2655 = vadd.f32 %v2653, %v2654
        %v2656 = vsel %vm2594, %v2593, 0.0
        %v2657 = vadd.f32 %v2655, %v2656
        %v2658 = vrot.slane %v2657, 4
        %v2659 = vadd.f32 %v2657, %v2658
        %v2660 = vrot.slane %v2659, 2
        %v2661 = vadd.f32 %v2659, %v2660
        %v2662 = vrot.slane %v2661, 1
        %v2663 = vadd.f32 %v2661, %v2662
        %v2664 = vmul.f32 %v2663, 0.00390625
        %v2665 = vpack.c.bf16 %v2664, %v2664
        %v2666 = vld [vmem:[%s3] sm:$0xf]
        %v2667 = vld [vmem:[%s3 + $0x4] sm:$0xf]
        %v2668 = vld [vmem:[%s3 + $0x8] sm:$0xf]
        %v2669 = vld [vmem:[%s3 + $0xc] sm:$0xf]
        %v2670 = vld [vmem:[%s4] sm:$0x1]
        %v2675 = vunpack.c.l.b16 %v2666
        %v2676 = vunpack.c.l.b16 %v2667
        %v2677 = vunpack.c.l.b16 %v2668
        %v2678 = vunpack.c.l.b16 %v2669
        %v2679 = vpack.c.b16 %v2676, %v2675
        %v2680 = vpack.c.b16 %v2678, %v2677
        %v2684 = vsel %vm2594, %v2665, 0
        %2686 = vmatprep.subr.bf16.mxu0 0
        %2687 = vmatpush1.bf16.msra.mxu0 %v2679
        %2688 = vmatprep.subr.bf16.mxu0 0
        %2689 = vmatpush1.bf16.msra.mxu0 %v2680
        %2690 = vmatprep.subr.bf16.mxu0 0
        %2691 = vmatpush1.bf16.msra.mxu0 0
        %2692 = vmatprep.subr.bf16.mxu0 0
        %2693 = vmatpush1.bf16.msra.mxu0 0
        %2694 = vmatprep.subr.bf16.mxu0 0
        %2695 = vmatpush1.bf16.msra.mxu0 0
        %2696 = vmatprep.subr.bf16.mxu0 0
        %2697 = vmatpush1.bf16.msra.mxu0 0
        %2698 = vmatprep.subr.bf16.mxu0 0
        %2699 = vmatpush1.bf16.msra.mxu0 0
        %2700 = vmatprep.subr.bf16.mxu0 0
        %2701 = vmatpush1.bf16.msra.mxu0 0
        %2702 = vmatprep.subr.bf16.mxu0 0
        %2703 = vmatpush1.bf16.msra.mxu0 0
        %2704 = vmatprep.subr.bf16.mxu0 0
        %2705 = vmatpush1.bf16.msra.mxu0 0
        %2706 = vmatprep.subr.bf16.mxu0 0
        %2707 = vmatpush1.bf16.msra.mxu0 0
        %2708 = vmatprep.subr.bf16.mxu0 0
        %2709 = vmatpush1.bf16.msra.mxu0 0
        %2710 = vmatprep.subr.bf16.mxu0 0
        %2711 = vmatpush1.bf16.msra.mxu0 0
        %2712 = vmatprep.subr.bf16.mxu0 0
        %2713 = vmatpush1.bf16.msra.mxu0 0
        %2714 = vmatprep.subr.bf16.mxu0 0
        %2715 = vmatpush1.bf16.msra.mxu0 0
        %2716 = vmatprep.subr.bf16.mxu0 0
        %2717 = vmatpush1.bf16.msra.mxu0 0
        %2718 = vmatprep.mubr.bf16.mxu0 0
        %2719 = vmatmul.mubr.bf16.gmra.mrb[0].mxu0 %v2684
        %v2720 = vpop.f32.mrb[0].mxu0
        %v2721 = vadd.f32 %v2670, %v2720
        %v2722 = vpop.f32.mrb[0].mxu0
        %v2723 = vpop.f32.mrb[0].mxu0
        %v2724 = vpop.f32.mrb[0].mxu0
        %2725 = vdwg.mxu0
        %2726 = vst [vmem:[%s216] sm:$0x1] %v2721
        %s2727 = sand.u32 %s137, 1
        %s2728 = scalar_lea.sflag [#allocation3], %s2727
        %s2729 = sand.u32 %s137, 1
        %s2730 = scalar_lea.vmem [#allocation2], %s2729
        // Predicated region
        $region41: #{base_model_forward.1} parent=39 // pred_check
          %p2731 = pneg %p147
        $region42: #{base_model_forward.1} parent=39 // pred_check_branch
          %2733 = sbr.rel (%p2731) target = $region44
        $region43: #{base_model_forward.1} parent=39 // pred_region
          %s2735 = ssub.s32 16, 16
          %2736 = vsyncadd %s2728, %s2735
          %s2737 = smul.addr %s19, 16
          %s2738 = scalar_lea.hbm %s5, %s2737
          %s2740 = sshll.u32 %s2730, 4
          %s2741 = int_to_ptr.vmem [resolvable:$true] %s2740
          %2743 = dma.vmem_to_hbm [thread:$0]  %s2741, 16, %s2738, %s2728
        $region44: #{base_model_forward.1} parent=39 // pred_fallthru
          _
      $region40: #{base_model_forward.1} parent=5 // pred_fallthru
        _
      %p2744 = scmp.le.s32.totalorder 2, %s14
      // Predicated region
      $region45: #{base_model_forward.1} parent=5 // pred_check
        %p2745 = pneg %p2744
      $region46: #{base_model_forward.1} parent=5 // pred_check_branch
        %2747 = sbr.rel (%p2745) target = $region48
      $region47: #{base_model_forward.1} parent=5 // pred_region
        %s2748 = ssub.s32 %s14, 2
        // Predicated region
        $region49: #{base_model_forward.1} parent=47 // pred_check
          %p2749 = pneg %p153
        $region50: #{base_model_forward.1} parent=47 // pred_check_branch
          %2751 = sbr.rel (%p2749) target = $region52
        $region51: #{base_model_forward.1} parent=47 // pred_region
          %s2752 = sand.u32 %s138, 1
          %s2753 = scalar_lea.sflag [#allocation3], %s2752
          %s2754 = sand.u32 %s138, 1
          %s2755 = scalar_lea.vmem [#allocation2], %s2754
          %2756 = dma.done %s2753, 16
        $region52: #{base_model_forward.1} parent=47 // pred_fallthru
          _
      $region48: #{base_model_forward.1} parent=5 // pred_fallthru
        _
    $region6: #{base_model_forward.1} parent=1 // loop_footer
      %s18 = sadd.s32 1, %s14
    $region7: #{base_model_forward.1} parent=1 // loop_footer_branch
      %13 = sbr.rel target = $region3
    $region8: #{base_model_forward.1} parent=1 // loop_exit
      _
    %2757 = vsyncpa [#allocation3], 1
    %s2758 = scalar_lea.sflag [#allocation3], 1
    %2759 = vsyncpa %s2758, 1

</llo_original>
